<compile_context>
chip_gen: v6e
topology: v6e:2x2x1
jax: 0.10.0
libtpu: 0.0.40
codegen_flags: <defaults>
</compile_context>

<pallas_src>
import jax
import jax.numpy as jnp
from jax.experimental import pallas as pl
from jax.experimental.pallas import tpu as pltpu

IN_DIM = 1024 + 64        # 1088
H1 = 512
H2 = 256
OUT_DIM = 3
OUT_PAD = 128             # lane-dense padded output width
TM_MAX = 1024             # batch tile for large batches
ROW_ALIGN = 16            # row alignment when splitting tiles
MEGACORE_SPLIT_MIN = 512  # split single-tile batches >= this into 2 tiles (v7x)


def _round_up(x, m):
    return (x + m - 1) // m * m


def _mlp_kernel(x_ref, w1_ref, b1_ref, w2_ref, b2_ref, w3_ref, b3_ref, o_ref):
    # x arrives as f32 (single HBM read of the original tensor) and is cast to
    # bf16 in-kernel for the MXU; accumulation and the bias/ReLU epilogue are
    # f32 (v5e has no bf16 VPU support).
    x = x_ref[...].astype(jnp.bfloat16)
    h1 = jnp.dot(x, w1_ref[...], preferred_element_type=jnp.float32) + b1_ref[...]
    h1 = jnp.maximum(h1, 0.0).astype(jnp.bfloat16)
    h2 = jnp.dot(h1, w2_ref[...], preferred_element_type=jnp.float32) + b2_ref[...]
    h2 = jnp.maximum(h2, 0.0).astype(jnp.bfloat16)
    y = jnp.dot(h2, w3_ref[...], preferred_element_type=jnp.float32) + b3_ref[...]
    o_ref[...] = y.astype(o_ref.dtype)


def prepare_params(params):
    """One-time parameter prep: bf16 weights, f32 biases, w3/b3 padded to 128.

    Call this ONCE; re-casting / re-padding per forward call would roughly
    triple the weight HBM traffic for small-batch inference.
    """
    w1, b1, w2, b2, w3, b3 = params
    w1_b = w1.astype(jnp.bfloat16)
    w2_b = w2.astype(jnp.bfloat16)
    w3_p = jnp.pad(w3, ((0, 0), (0, OUT_PAD - OUT_DIM))).astype(jnp.bfloat16)
    b1_f = b1.reshape(1, H1).astype(jnp.float32)
    b2_f = b2.reshape(1, H2).astype(jnp.float32)
    b3_p = jnp.pad(b3.reshape(1, OUT_DIM),
                   ((0, 0), (0, OUT_PAD - OUT_DIM))).astype(jnp.float32)
    return (w1_b, b1_f, w2_b, b2_f, w3_p, b3_p)


def _select_tm(B):
    if B > TM_MAX:
        return TM_MAX
    if B >= MEGACORE_SPLIT_MIN:
        # Two (or more) tiles so dimension_semantics=("parallel",) can shard
        # the batch axis across both TensorCores on v7x.
        return _round_up((B + 1) // 2, ROW_ALIGN)
    # Tiny / small batch: single full-extent tile (block == array rows).
    return B


def regressor_forward(x, prepared_params):
    """x: (B, 1088) float32, prepared_params from prepare_params -> (B, 3) float32."""
    w1_b, b1_f, w2_b, b2_f, w3_p, b3_p = prepared_params
    B = x.shape[0]

    tm = _select_tm(B)
    grid = (pl.cdiv(B, tm),)

    resident = lambda shape: pl.BlockSpec(shape, lambda i: (0, 0))

    flops = 2 * B * (IN_DIM * H1 + H1 * H2 + H2 * OUT_PAD)
    bytes_accessed = (
        B * IN_DIM * 4                                   # x (f32, read once)
        + w1_b.size * 2 + w2_b.size * 2 + w3_p.size * 2  # bf16 weights
        + b1_f.size * 4 + b2_f.size * 4 + b3_p.size * 4  # f32 biases
        + B * OUT_PAD * 2                                # bf16 output
    )

    out_pad = pl.pallas_call(
        _mlp_kernel,
        out_shape=jax.ShapeDtypeStruct((B, OUT_PAD), jnp.bfloat16),
        grid=grid,
        in_specs=[
            pl.BlockSpec((tm, IN_DIM), lambda i: (i, 0)),   # x tile (pipelined)
            resident((IN_DIM, H1)),                         # w1 (VMEM-resident)
            resident((1, H1)),                              # b1
            resident((H1, H2)),                             # w2
            resident((1, H2)),                              # b2
            resident((H2, OUT_PAD)),                        # w3 (padded)
            resident((1, OUT_PAD)),                         # b3 (padded)
        ],
        out_specs=pl.BlockSpec((tm, OUT_PAD), lambda i: (i, 0)),
        compiler_params=pltpu.CompilerParams(
            dimension_semantics=("parallel",),
            # TM=1024 footprint is ~16 MB (f32 x double-buffer dominates);
            # 32 MiB fits every generation (v5e default scoped is only 16 MiB).
            vmem_limit_bytes=32 * 1024 * 1024,
        ),
        cost_estimate=pl.CostEstimate(
            flops=flops, transcendentals=0, bytes_accessed=bytes_accessed
        ),
    )(x, w1_b, b1_f, w2_b, b2_f, w3_p, b3_p)

    return out_pad[:, :OUT_DIM].astype(jnp.float32)


def init_params(key):
    # Deterministic synthetic parameters (uniform, roughly PyTorch-style scale).
    ks = jax.random.split(key, 6)

    def unif(k, shape, fan_in):
        bound = 1.0 / jnp.sqrt(fan_in)
        return jax.random.uniform(k, shape, jnp.float32, -bound, bound)

    w1 = unif(ks[0], (IN_DIM, H1), IN_DIM)
    b1 = unif(ks[1], (1, H1), IN_DIM)
    w2 = unif(ks[2], (H1, H2), H1)
    b2 = unif(ks[3], (1, H2), H1)
    w3 = unif(ks[4], (H2, OUT_DIM), H2)
    b3 = unif(ks[5], (1, OUT_DIM), H2)
    return (w1, b1, w2, b2, w3, b3)


def reference_forward(x, params):
    w1, b1, w2, b2, w3, b3 = params
    h1 = jnp.maximum(x @ w1 + b1, 0.0)
    h2 = jnp.maximum(h1 @ w2 + b2, 0.0)
    return h2 @ w3 + b3


if __name__ == "__main__":
    key = jax.random.PRNGKey(0)
    k_x, k_p = jax.random.split(key)

    B = 8  # small batch; feature dims fixed by the module (1088 -> 512 -> 256 -> 3)
    x = jax.random.normal(k_x, (B, IN_DIM), dtype=jnp.float32)
    params = init_params(k_p)
    prepared = prepare_params(params)   # one-time weight prep (bf16 cast + pad)

    out = regressor_forward(x, prepared)
    out = jax.block_until_ready(out)

    ref = reference_forward(x, params)
    assert out.shape == (B, OUT_DIM)
    # bf16 MXU operands / bf16 output store with f32 accumulation -> looser
    # tolerance vs the f32 reference.
    assert jnp.allclose(out, ref, atol=5e-2, rtol=5e-2)

    print("KERNEL_OK")
</pallas_src>

<mosaic_0001>
module attributes {stable_mosaic.version = 11 : i64} {
  func.func @_mlp_kernel(%arg0: i32, %arg1: memref<8x1088xf32, #tpu.memory_space<vmem>>, %arg2: memref<1088x512xbf16, #tpu.memory_space<vmem>>, %arg3: memref<1x512xf32, #tpu.memory_space<vmem>>, %arg4: memref<512x256xbf16, #tpu.memory_space<vmem>>, %arg5: memref<1x256xf32, #tpu.memory_space<vmem>>, %arg6: memref<256x128xbf16, #tpu.memory_space<vmem>>, %arg7: memref<1x128xf32, #tpu.memory_space<vmem>>, %arg8: memref<8x128xbf16, #tpu.memory_space<vmem>>) attributes {dimension_semantics = [#tpu.dimension_semantics<parallel>], iteration_bounds = array<i64: 1>, scalar_prefetch = 0 : i64, scratch_operands = 0 : i64, tpu.core_type = #tpu.core_type<tc>, window_params = [{transform_indices = @transform_0, window_bounds = array<i64: 8, 1088>}, {pipeline_mode = #tpu.pipeline_mode<synchronous>, transform_indices = @transform_1, window_bounds = array<i64: 1088, 512>}, {pipeline_mode = #tpu.pipeline_mode<synchronous>, transform_indices = @transform_2, window_bounds = array<i64: 1, 512>}, {pipeline_mode = #tpu.pipeline_mode<synchronous>, transform_indices = @transform_3, window_bounds = array<i64: 512, 256>}, {pipeline_mode = #tpu.pipeline_mode<synchronous>, transform_indices = @transform_4, window_bounds = array<i64: 1, 256>}, {pipeline_mode = #tpu.pipeline_mode<synchronous>, transform_indices = @transform_5, window_bounds = array<i64: 256, 128>}, {pipeline_mode = #tpu.pipeline_mode<synchronous>, transform_indices = @transform_6, window_bounds = array<i64: 1, 128>}, {transform_indices = @transform_7, window_bounds = array<i64: 8, 128>}]} {
    %c0 = arith.constant 0 : index
    %c0_0 = arith.constant 0 : index
    %0 = vector.load %arg1[%c0, %c0_0] : memref<8x1088xf32, #tpu.memory_space<vmem>>, vector<8x1088xf32>
    %1 = arith.truncf %0 : vector<8x1088xf32> to vector<8x1088xbf16>
    %c0_1 = arith.constant 0 : index
    %c0_2 = arith.constant 0 : index
    %2 = vector.load %arg2[%c0_1, %c0_2] : memref<1088x512xbf16, #tpu.memory_space<vmem>>, vector<1088x512xbf16>
    %cst = arith.constant dense<0.000000e+00> : vector<8x512xf32>
    %3 = tpu.matmul %1, %2, %cst {dimension_numbers = #tpu.dot_dimension_numbers<[1], [0], [0], [1], [0, 0, 1, 1], [], []>} : vector<8x1088xbf16>, vector<1088x512xbf16>, vector<8x512xf32> -> vector<8x512xf32>
    %c0_3 = arith.constant 0 : index
    %c0_4 = arith.constant 0 : index
    %4 = vector.load %arg3[%c0_3, %c0_4] : memref<1x512xf32, #tpu.memory_space<vmem>>, vector<1x512xf32>
    %5 = vector.broadcast %4 : vector<1x512xf32> to vector<8x512xf32>
    %6 = arith.addf %3, %5 : vector<8x512xf32>
    %cst_5 = arith.constant 0.000000e+00 : f32
    %7 = vector.broadcast %cst_5 : f32 to vector<8x512xf32>
    %8 = arith.maximumf %6, %7 : vector<8x512xf32>
    %9 = arith.truncf %8 : vector<8x512xf32> to vector<8x512xbf16>
    %c0_6 = arith.constant 0 : index
    %c0_7 = arith.constant 0 : index
    %10 = vector.load %arg4[%c0_6, %c0_7] : memref<512x256xbf16, #tpu.memory_space<vmem>>, vector<512x256xbf16>
    %cst_8 = arith.constant dense<0.000000e+00> : vector<8x256xf32>
    %11 = tpu.matmul %9, %10, %cst_8 {dimension_numbers = #tpu.dot_dimension_numbers<[1], [0], [0], [1], [0, 0, 1, 1], [], []>} : vector<8x512xbf16>, vector<512x256xbf16>, vector<8x256xf32> -> vector<8x256xf32>
    %c0_9 = arith.constant 0 : index
    %c0_10 = arith.constant 0 : index
    %12 = vector.load %arg5[%c0_9, %c0_10] : memref<1x256xf32, #tpu.memory_space<vmem>>, vector<1x256xf32>
    %13 = vector.broadcast %12 : vector<1x256xf32> to vector<8x256xf32>
    %14 = arith.addf %11, %13 : vector<8x256xf32>
    %cst_11 = arith.constant 0.000000e+00 : f32
    %15 = vector.broadcast %cst_11 : f32 to vector<8x256xf32>
    %16 = arith.maximumf %14, %15 : vector<8x256xf32>
    %17 = arith.truncf %16 : vector<8x256xf32> to vector<8x256xbf16>
    %c0_12 = arith.constant 0 : index
    %c0_13 = arith.constant 0 : index
    %18 = vector.load %arg6[%c0_12, %c0_13] : memref<256x128xbf16, #tpu.memory_space<vmem>>, vector<256x128xbf16>
    %cst_14 = arith.constant dense<0.000000e+00> : vector<8x128xf32>
    %19 = tpu.matmul %17, %18, %cst_14 {dimension_numbers = #tpu.dot_dimension_numbers<[1], [0], [0], [1], [0, 0, 1, 1], [], []>} : vector<8x256xbf16>, vector<256x128xbf16>, vector<8x128xf32> -> vector<8x128xf32>
    %c0_15 = arith.constant 0 : index
    %c0_16 = arith.constant 0 : index
    %20 = vector.load %arg7[%c0_15, %c0_16] : memref<1x128xf32, #tpu.memory_space<vmem>>, vector<1x128xf32>
    %21 = vector.broadcast %20 : vector<1x128xf32> to vector<8x128xf32>
    %22 = arith.addf %19, %21 : vector<8x128xf32>
    %23 = arith.truncf %22 : vector<8x128xf32> to vector<8x128xbf16>
    %c0_17 = arith.constant 0 : index
    %c0_18 = arith.constant 0 : index
    %24 = vector.load %arg8[%c0_17, %c0_18] : memref<8x128xbf16, #tpu.memory_space<vmem>>, vector<8x128xbf16>
    tpu.vector_store %arg8[%c0_17, %c0_18], %23 {strides = array<i32>} : memref<8x128xbf16, #tpu.memory_space<vmem>>, vector<8x128xbf16>,
    return
  }
  func.func @transform_0(%arg0: i32) -> (i32, i32) {
    %c0_i32 = arith.constant 0 : i32
    %c0_i32_0 = arith.constant 0 : i32
    return %arg0, %c0_i32 : i32, i32
  }
  func.func @transform_1(%arg0: i32) -> (i32, i32) {
    %c0_i32 = arith.constant 0 : i32
    %c0_i32_0 = arith.constant 0 : i32
    %c0_i32_1 = arith.constant 0 : i32
    return %c0_i32, %c0_i32_0 : i32, i32
  }
  func.func @transform_2(%arg0: i32) -> (i32, i32) {
    %c0_i32 = arith.constant 0 : i32
    %c0_i32_0 = arith.constant 0 : i32
    %c0_i32_1 = arith.constant 0 : i32
    return %c0_i32, %c0_i32_0 : i32, i32
  }
  func.func @transform_3(%arg0: i32) -> (i32, i32) {
    %c0_i32 = arith.constant 0 : i32
    %c0_i32_0 = arith.constant 0 : i32
    %c0_i32_1 = arith.constant 0 : i32
    return %c0_i32, %c0_i32_0 : i32, i32
  }
  func.func @transform_4(%arg0: i32) -> (i32, i32) {
    %c0_i32 = arith.constant 0 : i32
    %c0_i32_0 = arith.constant 0 : i32
    %c0_i32_1 = arith.constant 0 : i32
    return %c0_i32, %c0_i32_0 : i32, i32
  }
  func.func @transform_5(%arg0: i32) -> (i32, i32) {
    %c0_i32 = arith.constant 0 : i32
    %c0_i32_0 = arith.constant 0 : i32
    %c0_i32_1 = arith.constant 0 : i32
    return %c0_i32, %c0_i32_0 : i32, i32
  }
  func.func @transform_6(%arg0: i32) -> (i32, i32) {
    %c0_i32 = arith.constant 0 : i32
    %c0_i32_0 = arith.constant 0 : i32
    %c0_i32_1 = arith.constant 0 : i32
    return %c0_i32, %c0_i32_0 : i32, i32
  }
  func.func @transform_7(%arg0: i32) -> (i32, i32) {
    %c0_i32 = arith.constant 0 : i32
    %c0_i32_0 = arith.constant 0 : i32
    return %arg0, %c0_i32 : i32, i32
  }
}

</mosaic_0001>

<llo_original>
// kernel: tpu_custom_call.1
$region0: #{tpu_custom_call.1}
  #allocation0 [shape = 'u32[]', space=smem, size = 0x4, offset = 0x4, fixed_abs, tag = 'smem constant byte address 0x4 - core index']
  #allocation1 [shape = 'u32[144,128]{1,0:T(1,128)}', space=vmem, size = 0x12000, scoped, tag = 'internal scratch']
  %s0 = inlined_call_operand.hbm [shape: f32[8,1088], index: 0, kind: input, shape index: {}]
  %s1 = inlined_call_operand.hbm [shape: bf16[1088,512], index: 1, kind: input, shape index: {}]
  %s2 = inlined_call_operand.hbm [shape: f32[1,512], index: 2, kind: input, shape index: {}]
  %s3 = inlined_call_operand.hbm [shape: bf16[512,256], index: 3, kind: input, shape index: {}]
  %s4 = inlined_call_operand.hbm [shape: f32[1,256], index: 4, kind: input, shape index: {}]
  %s5 = inlined_call_operand.hbm [shape: bf16[256,128], index: 5, kind: input, shape index: {}]
  %s6 = inlined_call_operand.hbm [shape: f32[1,128], index: 6, kind: input, shape index: {}]
  %s7 = inlined_call_operand.hbm [shape: bf16[8,128], index: 7, kind: output, shape index: {}]
  %s8 = sld [smem:[#allocation0]]
  $region66: #{tpu_custom_call.1} parent=0
    _
  %s10 = ssub.s32 1, %s8
  %s11 = scalar_select 0, %s10, %s8
  $region1: #{tpu_custom_call.1} parent=0
    #allocation2 [shape = 'u8[36864]{0}', space=vmem, size = 0x9000, scoped, tag = 'input window, operand 0, single buffered']
    #allocation3 [shape = 's32[1]{0}', space=sflag, size = 0x4, scoped, tag = 'scoped memory for tpu_custom_call.1']
    #allocation4 [shape = 's32[1]{0}', space=sflag, size = 0x4, scoped, tag = 'scoped memory for tpu_custom_call.1']
    #allocation5 [shape = 'u8[1114112]{0}', space=vmem, size = 0x110000, scoped, tag = 'input window, operand 1, single buffered']
    #allocation6 [shape = 's32[1]{0}', space=sflag, size = 0x4, scoped, tag = 'scoped memory for tpu_custom_call.1']
    #allocation7 [shape = 'u8[2048]{0}', space=vmem, size = 0x800, scoped, tag = 'input window, operand 2, single buffered']
    #allocation8 [shape = 'u8[262144]{0}', space=vmem, size = 0x40000, scoped, tag = 'input window, operand 3, single buffered']
    #allocation9 [shape = 's32[1]{0}', space=sflag, size = 0x4, scoped, tag = 'scoped memory for tpu_custom_call.1']
    #allocation10 [shape = 'u8[1024]{0}', space=vmem, size = 0x400, scoped, tag = 'input window, operand 4, single buffered']
    #allocation11 [shape = 'u8[65536]{0}', space=vmem, size = 0x10000, scoped, tag = 'input window, operand 5, single buffered']
    #allocation12 [shape = 's32[1]{0}', space=sflag, size = 0x4, scoped, tag = 'scoped memory for tpu_custom_call.1']
    #allocation13 [shape = 'u8[512]{0}', space=vmem, size = 0x400, scoped, tag = 'input window, operand 6, single buffered']
    #allocation14 [shape = 'u8[2048]{0}', space=vmem, size = 0x800, scoped, tag = 'output window, operand 0, single buffered']
    %12 = vsyncpa [#allocation3], 0
    %13 = vsyncpa [#allocation6], 0
    %14 = vsyncpa [#allocation9], 0
    %15 = vsyncpa [#allocation12], 0
    %16 = vsyncpa [#allocation4], 0
    // Predicated region
    $region2: #{tpu_custom_call.1} parent=1 // pred_check
      _
    $region3: #{tpu_custom_call.1} parent=1 // pred_check_branch
      %18 = sbr.rel (0) target = $region5
    $region4: #{tpu_custom_call.1} parent=1 // pred_region
      %s20 = ssub.s32 1152, 1152
      %21 = vsyncadd [#allocation3], %s20
      %s23 = sshll.u32 [#allocation2], 4
      %s24 = int_to_ptr.vmem [resolvable:$true] %s23
      %26 = dma.hbm_to_vmem [thread:$0]  %s0, 1152, %s24, [#allocation3]
    $region5: #{tpu_custom_call.1} parent=1 // pred_fallthru
      _
    // Predicated region
    $region6: #{tpu_custom_call.1} parent=1 // pred_check
      _
    $region7: #{tpu_custom_call.1} parent=1 // pred_check_branch
      %28 = sbr.rel (0) target = $region9
    $region8: #{tpu_custom_call.1} parent=1 // pred_region
      %s30 = ssub.s32 34816, 34816
      %31 = vsyncadd [#allocation6], %s30
      %s32 = sshll.u32 [#allocation5], 4
      %s33 = int_to_ptr.vmem [resolvable:$true] %s32
      %38 = dma.hbm_to_vmem [thread:$0]  %s1, 34816, %s33, [#allocation6], 256, 256, 16
    $region9: #{tpu_custom_call.1} parent=1 // pred_fallthru
      _
    // Predicated region
    $region10: #{tpu_custom_call.1} parent=1 // pred_check
      _
    $region11: #{tpu_custom_call.1} parent=1 // pred_check_branch
      %40 = sbr.rel (0) target = $region13
    $region12: #{tpu_custom_call.1} parent=1 // pred_region
      %s42 = ssub.s32 64, 64
      %43 = vsyncadd [#allocation6], %s42
      %s45 = sshll.u32 [#allocation7], 4
      %s46 = int_to_ptr.vmem [resolvable:$true] %s45
      %48 = dma.hbm_to_vmem [thread:$0]  %s2, 64, %s46, [#allocation6]
    $region13: #{tpu_custom_call.1} parent=1 // pred_fallthru
      _
    // Predicated region
    $region14: #{tpu_custom_call.1} parent=1 // pred_check
      _
    $region15: #{tpu_custom_call.1} parent=1 // pred_check_branch
      %50 = sbr.rel (0) target = $region17
    $region16: #{tpu_custom_call.1} parent=1 // pred_region
      %s52 = ssub.s32 8192, 8192
      %53 = vsyncadd [#allocation9], %s52
      %s54 = sshll.u32 [#allocation8], 4
      %s55 = int_to_ptr.vmem [resolvable:$true] %s54
      %60 = dma.hbm_to_vmem [thread:$0]  %s3, 8192, %s55, [#allocation9], 128, 128, 8
    $region17: #{tpu_custom_call.1} parent=1 // pred_fallthru
      _
    // Predicated region
    $region18: #{tpu_custom_call.1} parent=1 // pred_check
      _
    $region19: #{tpu_custom_call.1} parent=1 // pred_check_branch
      %62 = sbr.rel (0) target = $region21
    $region20: #{tpu_custom_call.1} parent=1 // pred_region
      %s64 = ssub.s32 32, 32
      %65 = vsyncadd [#allocation9], %s64
      %s67 = sshll.u32 [#allocation10], 4
      %s68 = int_to_ptr.vmem [resolvable:$true] %s67
      %70 = dma.hbm_to_vmem [thread:$0]  %s4, 32, %s68, [#allocation9]
    $region21: #{tpu_custom_call.1} parent=1 // pred_fallthru
      _
    // Predicated region
    $region22: #{tpu_custom_call.1} parent=1 // pred_check
      _
    $region23: #{tpu_custom_call.1} parent=1 // pred_check_branch
      %72 = sbr.rel (0) target = $region25
    $region24: #{tpu_custom_call.1} parent=1 // pred_region
      %s74 = ssub.s32 2048, 2048
      %75 = vsyncadd [#allocation12], %s74
      %s76 = sshll.u32 [#allocation11], 4
      %s77 = int_to_ptr.vmem [resolvable:$true] %s76
      %82 = dma.hbm_to_vmem [thread:$0]  %s5, 2048, %s77, [#allocation12], 64, 64, 4
    $region25: #{tpu_custom_call.1} parent=1 // pred_fallthru
      _
    // Predicated region
    $region26: #{tpu_custom_call.1} parent=1 // pred_check
      _
    $region27: #{tpu_custom_call.1} parent=1 // pred_check_branch
      %84 = sbr.rel (0) target = $region29
    $region28: #{tpu_custom_call.1} parent=1 // pred_region
      %s86 = ssub.s32 16, 16
      %87 = vsyncadd [#allocation12], %s86
      %s89 = sshll.u32 [#allocation13], 4
      %s90 = int_to_ptr.vmem [resolvable:$true] %s89
      %92 = dma.hbm_to_vmem [thread:$0]  %s6, 16, %s90, [#allocation12]
    $region29: #{tpu_custom_call.1} parent=1 // pred_fallthru
      _
    // Predicated region
    $region30: #{tpu_custom_call.1} parent=1 // pred_check
      _
    $region31: #{tpu_custom_call.1} parent=1 // pred_check_branch
      %94 = sbr.rel (0) target = $region33
    $region32: #{tpu_custom_call.1} parent=1 // pred_region
      %95 = dma.done [#allocation3], 1152
    $region33: #{tpu_custom_call.1} parent=1 // pred_fallthru
      _
    // Predicated region
    $region34: #{tpu_custom_call.1} parent=1 // pred_check
      _
    $region35: #{tpu_custom_call.1} parent=1 // pred_check_branch
      %97 = sbr.rel (0) target = $region37
    $region36: #{tpu_custom_call.1} parent=1 // pred_region
      %98 = dma.done [#allocation6], 34816
    $region37: #{tpu_custom_call.1} parent=1 // pred_fallthru
      _
    // Predicated region
    $region38: #{tpu_custom_call.1} parent=1 // pred_check
      _
    $region39: #{tpu_custom_call.1} parent=1 // pred_check_branch
      %100 = sbr.rel (0) target = $region41
    $region40: #{tpu_custom_call.1} parent=1 // pred_region
      %101 = dma.done [#allocation6], 64
    $region41: #{tpu_custom_call.1} parent=1 // pred_fallthru
      _
    // Predicated region
    $region42: #{tpu_custom_call.1} parent=1 // pred_check
      _
    $region43: #{tpu_custom_call.1} parent=1 // pred_check_branch
      %103 = sbr.rel (0) target = $region45
    $region44: #{tpu_custom_call.1} parent=1 // pred_region
      %104 = dma.done [#allocation9], 8192
    $region45: #{tpu_custom_call.1} parent=1 // pred_fallthru
      _
    // Predicated region
    $region46: #{tpu_custom_call.1} parent=1 // pred_check
      _
    $region47: #{tpu_custom_call.1} parent=1 // pred_check_branch
      %106 = sbr.rel (0) target = $region49
    $region48: #{tpu_custom_call.1} parent=1 // pred_region
      %107 = dma.done [#allocation9], 32
    $region49: #{tpu_custom_call.1} parent=1 // pred_fallthru
      _
    // Predicated region
    $region50: #{tpu_custom_call.1} parent=1 // pred_check
      _
    $region51: #{tpu_custom_call.1} parent=1 // pred_check_branch
      %109 = sbr.rel (0) target = $region53
    $region52: #{tpu_custom_call.1} parent=1 // pred_region
      %110 = dma.done [#allocation12], 2048
    $region53: #{tpu_custom_call.1} parent=1 // pred_fallthru
      _
    // Predicated region
    $region54: #{tpu_custom_call.1} parent=1 // pred_check
      _
    $region55: #{tpu_custom_call.1} parent=1 // pred_check_branch
      %112 = sbr.rel (0) target = $region57
    $region56: #{tpu_custom_call.1} parent=1 // pred_region
      %113 = dma.done [#allocation12], 16
    $region57: #{tpu_custom_call.1} parent=1 // pred_fallthru
      _
    %v115 = vld [vmem:[#allocation2] sm:$0xff]
    %v116 = vld [vmem:[#allocation2 + $0x8] sm:$0xff]
    %v117 = vld [vmem:[#allocation2 + $0x10] sm:$0xff]
    %v118 = vld [vmem:[#allocation2 + $0x18] sm:$0xff]
    %v119 = vld [vmem:[#allocation2 + $0x20] sm:$0xff]
    %v120 = vld [vmem:[#allocation2 + $0x28] sm:$0xff]
    %v121 = vld [vmem:[#allocation2 + $0x30] sm:$0xff]
    %v122 = vld [vmem:[#allocation2 + $0x38] sm:$0xff]
    %v123 = vld [vmem:[#allocation2 + $0x40] sm:$0xff]
    %v124 = vpack.c.bf16 %v115, %v115
    %v125 = vpack.c.bf16 %v116, %v116
    %v126 = vpack.c.bf16 %v117, %v117
    %v127 = vpack.c.bf16 %v118, %v118
    %v128 = vpack.c.bf16 %v119, %v119
    %v129 = vpack.c.bf16 %v120, %v120
    %v130 = vpack.c.bf16 %v121, %v121
    %v131 = vpack.c.bf16 %v122, %v122
    %v132 = vpack.c.bf16 %v123, %v123
    %v133 = vld [vmem:[#allocation5] sm:$0xff]
    %v134 = vld [vmem:[#allocation5 + $0x8] sm:$0xff]
    %v135 = vld [vmem:[#allocation5 + $0x10] sm:$0xff]
    %v136 = vld [vmem:[#allocation5 + $0x18] sm:$0xff]
    %v137 = vld [vmem:[#allocation5 + $0x20] sm:$0xff]
    %v138 = vld [vmem:[#allocation5 + $0x28] sm:$0xff]
    %v139 = vld [vmem:[#allocation5 + $0x30] sm:$0xff]
    %v140 = vld [vmem:[#allocation5 + $0x38] sm:$0xff]
    %v141 = vld [vmem:[#allocation5 + $0x40] sm:$0xff]
    %v142 = vld [vmem:[#allocation5 + $0x48] sm:$0xff]
    %v143 = vld [vmem:[#allocation5 + $0x50] sm:$0xff]
    %v144 = vld [vmem:[#allocation5 + $0x58] sm:$0xff]
    %v145 = vld [vmem:[#allocation5 + $0x60] sm:$0xff]
    %v146 = vld [vmem:[#allocation5 + $0x68] sm:$0xff]
    %v147 = vld [vmem:[#allocation5 + $0x70] sm:$0xff]
    %v148 = vld [vmem:[#allocation5 + $0x78] sm:$0xff]
    %v149 = vld [vmem:[#allocation5 + $0x80] sm:$0xff]
    %v150 = vld [vmem:[#allocation5 + $0x88] sm:$0xff]
    %v151 = vld [vmem:[#allocation5 + $0x90] sm:$0xff]
    %v152 = vld [vmem:[#allocation5 + $0x98] sm:$0xff]
    %v153 = vld [vmem:[#allocation5 + $0xa0] sm:$0xff]
    %v154 = vld [vmem:[#allocation5 + $0xa8] sm:$0xff]
    %v155 = vld [vmem:[#allocation5 + $0xb0] sm:$0xff]
    %v156 = vld [vmem:[#allocation5 + $0xb8] sm:$0xff]
    %v157 = vld [vmem:[#allocation5 + $0xc0] sm:$0xff]
    %v158 = vld [vmem:[#allocation5 + $0xc8] sm:$0xff]
    %v159 = vld [vmem:[#allocation5 + $0xd0] sm:$0xff]
    %v160 = vld [vmem:[#allocation5 + $0xd8] sm:$0xff]
    %v161 = vld [vmem:[#allocation5 + $0xe0] sm:$0xff]
    %v162 = vld [vmem:[#allocation5 + $0xe8] sm:$0xff]
    %v163 = vld [vmem:[#allocation5 + $0xf0] sm:$0xff]
    %v164 = vld [vmem:[#allocation5 + $0xf8] sm:$0xff]
    %v165 = vld [vmem:[#allocation5 + $0x100] sm:$0xff]
    %v166 = vld [vmem:[#allocation5 + $0x108] sm:$0xff]
    %v167 = vld [vmem:[#allocation5 + $0x110] sm:$0xff]
    %v168 = vld [vmem:[#allocation5 + $0x118] sm:$0xff]
    %v169 = vld [vmem:[#allocation5 + $0x120] sm:$0xff]
    %v170 = vld [vmem:[#allocation5 + $0x128] sm:$0xff]
    %v171 = vld [vmem:[#allocation5 + $0x130] sm:$0xff]
    %v172 = vld [vmem:[#allocation5 + $0x138] sm:$0xff]
    %v173 = vld [vmem:[#allocation5 + $0x140] sm:$0xff]
    %v174 = vld [vmem:[#allocation5 + $0x148] sm:$0xff]
    %v175 = vld [vmem:[#allocation5 + $0x150] sm:$0xff]
    %v176 = vld [vmem:[#allocation5 + $0x158] sm:$0xff]
    %v177 = vld [vmem:[#allocation5 + $0x160] sm:$0xff]
    %v178 = vld [vmem:[#allocation5 + $0x168] sm:$0xff]
    %v179 = vld [vmem:[#allocation5 + $0x170] sm:$0xff]
    %v180 = vld [vmem:[#allocation5 + $0x178] sm:$0xff]
    %v181 = vld [vmem:[#allocation5 + $0x180] sm:$0xff]
    %v182 = vld [vmem:[#allocation5 + $0x188] sm:$0xff]
    %v183 = vld [vmem:[#allocation5 + $0x190] sm:$0xff]
    %v184 = vld [vmem:[#allocation5 + $0x198] sm:$0xff]
    %v185 = vld [vmem:[#allocation5 + $0x1a0] sm:$0xff]
    %v186 = vld [vmem:[#allocation5 + $0x1a8] sm:$0xff]
    %v187 = vld [vmem:[#allocation5 + $0x1b0] sm:$0xff]
    %v188 = vld [vmem:[#allocation5 + $0x1b8] sm:$0xff]
    %v189 = vld [vmem:[#allocation5 + $0x1c0] sm:$0xff]
    %v190 = vld [vmem:[#allocation5 + $0x1c8] sm:$0xff]
    %v191 = vld [vmem:[#allocation5 + $0x1d0] sm:$0xff]
    %v192 = vld [vmem:[#allocation5 + $0x1d8] sm:$0xff]
    %v193 = vld [vmem:[#allocation5 + $0x1e0] sm:$0xff]
    %v194 = vld [vmem:[#allocation5 + $0x1e8] sm:$0xff]
    %v195 = vld [vmem:[#allocation5 + $0x1f0] sm:$0xff]
    %v196 = vld [vmem:[#allocation5 + $0x1f8] sm:$0xff]
    %v197 = vld [vmem:[#allocation5 + $0x200] sm:$0xff]
    %v198 = vld [vmem:[#allocation5 + $0x208] sm:$0xff]
    %v199 = vld [vmem:[#allocation5 + $0x210] sm:$0xff]
    %v200 = vld [vmem:[#allocation5 + $0x218] sm:$0xff]
    %v201 = vld [vmem:[#allocation5 + $0x220] sm:$0xff]
    %v202 = vld [vmem:[#allocation5 + $0x228] sm:$0xff]
    %v203 = vld [vmem:[#allocation5 + $0x230] sm:$0xff]
    %v204 = vld [vmem:[#allocation5 + $0x238] sm:$0xff]
    %v205 = vld [vmem:[#allocation5 + $0x240] sm:$0xff]
    %v206 = vld [vmem:[#allocation5 + $0x248] sm:$0xff]
    %v207 = vld [vmem:[#allocation5 + $0x250] sm:$0xff]
    %v208 = vld [vmem:[#allocation5 + $0x258] sm:$0xff]
    %v209 = vld [vmem:[#allocation5 + $0x260] sm:$0xff]
    %v210 = vld [vmem:[#allocation5 + $0x268] sm:$0xff]
    %v211 = vld [vmem:[#allocation5 + $0x270] sm:$0xff]
    %v212 = vld [vmem:[#allocation5 + $0x278] sm:$0xff]
    %v213 = vld [vmem:[#allocation5 + $0x280] sm:$0xff]
    %v214 = vld [vmem:[#allocation5 + $0x288] sm:$0xff]
    %v215 = vld [vmem:[#allocation5 + $0x290] sm:$0xff]
    %v216 = vld [vmem:[#allocation5 + $0x298] sm:$0xff]
    %v217 = vld [vmem:[#allocation5 + $0x2a0] sm:$0xff]
    %v218 = vld [vmem:[#allocation5 + $0x2a8] sm:$0xff]
    %v219 = vld [vmem:[#allocation5 + $0x2b0] sm:$0xff]
    %v220 = vld [vmem:[#allocation5 + $0x2b8] sm:$0xff]
    %v221 = vld [vmem:[#allocation5 + $0x2c0] sm:$0xff]
    %v222 = vld [vmem:[#allocation5 + $0x2c8] sm:$0xff]
    %v223 = vld [vmem:[#allocation5 + $0x2d0] sm:$0xff]
    %v224 = vld [vmem:[#allocation5 + $0x2d8] sm:$0xff]
    %v225 = vld [vmem:[#allocation5 + $0x2e0] sm:$0xff]
    %v226 = vld [vmem:[#allocation5 + $0x2e8] sm:$0xff]
    %v227 = vld [vmem:[#allocation5 + $0x2f0] sm:$0xff]
    %v228 = vld [vmem:[#allocation5 + $0x2f8] sm:$0xff]
    %v229 = vld [vmem:[#allocation5 + $0x300] sm:$0xff]
    %v230 = vld [vmem:[#allocation5 + $0x308] sm:$0xff]
    %v231 = vld [vmem:[#allocation5 + $0x310] sm:$0xff]
    %v232 = vld [vmem:[#allocation5 + $0x318] sm:$0xff]
    %v233 = vld [vmem:[#allocation5 + $0x320] sm:$0xff]
    %v234 = vld [vmem:[#allocation5 + $0x328] sm:$0xff]
    %v235 = vld [vmem:[#allocation5 + $0x330] sm:$0xff]
    %v236 = vld [vmem:[#allocation5 + $0x338] sm:$0xff]
    %v237 = vld [vmem:[#allocation5 + $0x340] sm:$0xff]
    %v238 = vld [vmem:[#allocation5 + $0x348] sm:$0xff]
    %v239 = vld [vmem:[#allocation5 + $0x350] sm:$0xff]
    %v240 = vld [vmem:[#allocation5 + $0x358] sm:$0xff]
    %v241 = vld [vmem:[#allocation5 + $0x360] sm:$0xff]
    %v242 = vld [vmem:[#allocation5 + $0x368] sm:$0xff]
    %v243 = vld [vmem:[#allocation5 + $0x370] sm:$0xff]
    %v244 = vld [vmem:[#allocation5 + $0x378] sm:$0xff]
    %v245 = vld [vmem:[#allocation5 + $0x380] sm:$0xff]
    %v246 = vld [vmem:[#allocation5 + $0x388] sm:$0xff]
    %v247 = vld [vmem:[#allocation5 + $0x390] sm:$0xff]
    %v248 = vld [vmem:[#allocation5 + $0x398] sm:$0xff]
    %v249 = vld [vmem:[#allocation5 + $0x3a0] sm:$0xff]
    %v250 = vld [vmem:[#allocation5 + $0x3a8] sm:$0xff]
    %v251 = vld [vmem:[#allocation5 + $0x3b0] sm:$0xff]
    %v252 = vld [vmem:[#allocation5 + $0x3b8] sm:$0xff]
    %v253 = vld [vmem:[#allocation5 + $0x3c0] sm:$0xff]
    %v254 = vld [vmem:[#allocation5 + $0x3c8] sm:$0xff]
    %v255 = vld [vmem:[#allocation5 + $0x3d0] sm:$0xff]
    %v256 = vld [vmem:[#allocation5 + $0x3d8] sm:$0xff]
    %v257 = vld [vmem:[#allocation5 + $0x3e0] sm:$0xff]
    %v258 = vld [vmem:[#allocation5 + $0x3e8] sm:$0xff]
    %v259 = vld [vmem:[#allocation5 + $0x3f0] sm:$0xff]
    %v260 = vld [vmem:[#allocation5 + $0x3f8] sm:$0xff]
    %v261 = vld [vmem:[#allocation5 + $0x400] sm:$0xff]
    %v262 = vld [vmem:[#allocation5 + $0x408] sm:$0xff]
    %v263 = vld [vmem:[#allocation5 + $0x410] sm:$0xff]
    %v264 = vld [vmem:[#allocation5 + $0x418] sm:$0xff]
    %v265 = vld [vmem:[#allocation5 + $0x420] sm:$0xff]
    %v266 = vld [vmem:[#allocation5 + $0x428] sm:$0xff]
    %v267 = vld [vmem:[#allocation5 + $0x430] sm:$0xff]
    %v268 = vld [vmem:[#allocation5 + $0x438] sm:$0xff]
    %v269 = vld [vmem:[#allocation5 + $0x440] sm:$0xff]
    %v270 = vld [vmem:[#allocation5 + $0x448] sm:$0xff]
    %v271 = vld [vmem:[#allocation5 + $0x450] sm:$0xff]
    %v272 = vld [vmem:[#allocation5 + $0x458] sm:$0xff]
    %v273 = vld [vmem:[#allocation5 + $0x460] sm:$0xff]
    %v274 = vld [vmem:[#allocation5 + $0x468] sm:$0xff]
    %v275 = vld [vmem:[#allocation5 + $0x470] sm:$0xff]
    %v276 = vld [vmem:[#allocation5 + $0x478] sm:$0xff]
    %v277 = vld [vmem:[#allocation5 + $0x480] sm:$0xff]
    %v278 = vld [vmem:[#allocation5 + $0x488] sm:$0xff]
    %v279 = vld [vmem:[#allocation5 + $0x490] sm:$0xff]
    %v280 = vld [vmem:[#allocation5 + $0x498] sm:$0xff]
    %v281 = vld [vmem:[#allocation5 + $0x4a0] sm:$0xff]
    %v282 = vld [vmem:[#allocation5 + $0x4a8] sm:$0xff]
    %v283 = vld [vmem:[#allocation5 + $0x4b0] sm:$0xff]
    %v284 = vld [vmem:[#allocation5 + $0x4b8] sm:$0xff]
    %v285 = vld [vmem:[#allocation5 + $0x4c0] sm:$0xff]
    %v286 = vld [vmem:[#allocation5 + $0x4c8] sm:$0xff]
    %v287 = vld [vmem:[#allocation5 + $0x4d0] sm:$0xff]
    %v288 = vld [vmem:[#allocation5 + $0x4d8] sm:$0xff]
    %v289 = vld [vmem:[#allocation5 + $0x4e0] sm:$0xff]
    %v290 = vld [vmem:[#allocation5 + $0x4e8] sm:$0xff]
    %v291 = vld [vmem:[#allocation5 + $0x4f0] sm:$0xff]
    %v292 = vld [vmem:[#allocation5 + $0x4f8] sm:$0xff]
    %v293 = vld [vmem:[#allocation5 + $0x500] sm:$0xff]
    %v294 = vld [vmem:[#allocation5 + $0x508] sm:$0xff]
    %v295 = vld [vmem:[#allocation5 + $0x510] sm:$0xff]
    %v296 = vld [vmem:[#allocation5 + $0x518] sm:$0xff]
    %v297 = vld [vmem:[#allocation5 + $0x520] sm:$0xff]
    %v298 = vld [vmem:[#allocation5 + $0x528] sm:$0xff]
    %v299 = vld [vmem:[#allocation5 + $0x530] sm:$0xff]
    %v300 = vld [vmem:[#allocation5 + $0x538] sm:$0xff]
    %v301 = vld [vmem:[#allocation5 + $0x540] sm:$0xff]
    %v302 = vld [vmem:[#allocation5 + $0x548] sm:$0xff]
    %v303 = vld [vmem:[#allocation5 + $0x550] sm:$0xff]
    %v304 = vld [vmem:[#allocation5 + $0x558] sm:$0xff]
    %v305 = vld [vmem:[#allocation5 + $0x560] sm:$0xff]
    %v306 = vld [vmem:[#allocation5 + $0x568] sm:$0xff]
    %v307 = vld [vmem:[#allocation5 + $0x570] sm:$0xff]
    %v308 = vld [vmem:[#allocation5 + $0x578] sm:$0xff]
    %v309 = vld [vmem:[#allocation5 + $0x580] sm:$0xff]
    %v310 = vld [vmem:[#allocation5 + $0x588] sm:$0xff]
    %v311 = vld [vmem:[#allocation5 + $0x590] sm:$0xff]
    %v312 = vld [vmem:[#allocation5 + $0x598] sm:$0xff]
    %v313 = vld [vmem:[#allocation5 + $0x5a0] sm:$0xff]
    %v314 = vld [vmem:[#allocation5 + $0x5a8] sm:$0xff]
    %v315 = vld [vmem:[#allocation5 + $0x5b0] sm:$0xff]
    %v316 = vld [vmem:[#allocation5 + $0x5b8] sm:$0xff]
    %v317 = vld [vmem:[#allocation5 + $0x5c0] sm:$0xff]
    %v318 = vld [vmem:[#allocation5 + $0x5c8] sm:$0xff]
    %v319 = vld [vmem:[#allocation5 + $0x5d0] sm:$0xff]
    %v320 = vld [vmem:[#allocation5 + $0x5d8] sm:$0xff]
    %v321 = vld [vmem:[#allocation5 + $0x5e0] sm:$0xff]
    %v322 = vld [vmem:[#allocation5 + $0x5e8] sm:$0xff]
    %v323 = vld [vmem:[#allocation5 + $0x5f0] sm:$0xff]
    %v324 = vld [vmem:[#allocation5 + $0x5f8] sm:$0xff]
    %v325 = vld [vmem:[#allocation5 + $0x600] sm:$0xff]
    %v326 = vld [vmem:[#allocation5 + $0x608] sm:$0xff]
    %v327 = vld [vmem:[#allocation5 + $0x610] sm:$0xff]
    %v328 = vld [vmem:[#allocation5 + $0x618] sm:$0xff]
    %v329 = vld [vmem:[#allocation5 + $0x620] sm:$0xff]
    %v330 = vld [vmem:[#allocation5 + $0x628] sm:$0xff]
    %v331 = vld [vmem:[#allocation5 + $0x630] sm:$0xff]
    %v332 = vld [vmem:[#allocation5 + $0x638] sm:$0xff]
    %v333 = vld [vmem:[#allocation5 + $0x640] sm:$0xff]
    %v334 = vld [vmem:[#allocation5 + $0x648] sm:$0xff]
    %v335 = vld [vmem:[#allocation5 + $0x650] sm:$0xff]
    %v336 = vld [vmem:[#allocation5 + $0x658] sm:$0xff]
    %v337 = vld [vmem:[#allocation5 + $0x660] sm:$0xff]
    %v338 = vld [vmem:[#allocation5 + $0x668] sm:$0xff]
    %v339 = vld [vmem:[#allocation5 + $0x670] sm:$0xff]
    %v340 = vld [vmem:[#allocation5 + $0x678] sm:$0xff]
    %v341 = vld [vmem:[#allocation5 + $0x680] sm:$0xff]
    %v342 = vld [vmem:[#allocation5 + $0x688] sm:$0xff]
    %v343 = vld [vmem:[#allocation5 + $0x690] sm:$0xff]
    %v344 = vld [vmem:[#allocation5 + $0x698] sm:$0xff]
    %v345 = vld [vmem:[#allocation5 + $0x6a0] sm:$0xff]
    %v346 = vld [vmem:[#allocation5 + $0x6a8] sm:$0xff]
    %v347 = vld [vmem:[#allocation5 + $0x6b0] sm:$0xff]
    %v348 = vld [vmem:[#allocation5 + $0x6b8] sm:$0xff]
    %v349 = vld [vmem:[#allocation5 + $0x6c0] sm:$0xff]
    %v350 = vld [vmem:[#allocation5 + $0x6c8] sm:$0xff]
    %v351 = vld [vmem:[#allocation5 + $0x6d0] sm:$0xff]
    %v352 = vld [vmem:[#allocation5 + $0x6d8] sm:$0xff]
    %v353 = vld [vmem:[#allocation5 + $0x6e0] sm:$0xff]
    %v354 = vld [vmem:[#allocation5 + $0x6e8] sm:$0xff]
    %v355 = vld [vmem:[#allocation5 + $0x6f0] sm:$0xff]
    %v356 = vld [vmem:[#allocation5 + $0x6f8] sm:$0xff]
    %v357 = vld [vmem:[#allocation5 + $0x700] sm:$0xff]
    %v358 = vld [vmem:[#allocation5 + $0x708] sm:$0xff]
    %v359 = vld [vmem:[#allocation5 + $0x710] sm:$0xff]
    %v360 = vld [vmem:[#allocation5 + $0x718] sm:$0xff]
    %v361 = vld [vmem:[#allocation5 + $0x720] sm:$0xff]
    %v362 = vld [vmem:[#allocation5 + $0x728] sm:$0xff]
    %v363 = vld [vmem:[#allocation5 + $0x730] sm:$0xff]
    %v364 = vld [vmem:[#allocation5 + $0x738] sm:$0xff]
    %v365 = vld [vmem:[#allocation5 + $0x740] sm:$0xff]
    %v366 = vld [vmem:[#allocation5 + $0x748] sm:$0xff]
    %v367 = vld [vmem:[#allocation5 + $0x750] sm:$0xff]
    %v368 = vld [vmem:[#allocation5 + $0x758] sm:$0xff]
    %v369 = vld [vmem:[#allocation5 + $0x760] sm:$0xff]
    %v370 = vld [vmem:[#allocation5 + $0x768] sm:$0xff]
    %v371 = vld [vmem:[#allocation5 + $0x770] sm:$0xff]
    %v372 = vld [vmem:[#allocation5 + $0x778] sm:$0xff]
    %v373 = vld [vmem:[#allocation5 + $0x780] sm:$0xff]
    %v374 = vld [vmem:[#allocation5 + $0x788] sm:$0xff]
    %v375 = vld [vmem:[#allocation5 + $0x790] sm:$0xff]
    %v376 = vld [vmem:[#allocation5 + $0x798] sm:$0xff]
    %v377 = vld [vmem:[#allocation5 + $0x7a0] sm:$0xff]
    %v378 = vld [vmem:[#allocation5 + $0x7a8] sm:$0xff]
    %v379 = vld [vmem:[#allocation5 + $0x7b0] sm:$0xff]
    %v380 = vld [vmem:[#allocation5 + $0x7b8] sm:$0xff]
    %v381 = vld [vmem:[#allocation5 + $0x7c0] sm:$0xff]
    %v382 = vld [vmem:[#allocation5 + $0x7c8] sm:$0xff]
    %v383 = vld [vmem:[#allocation5 + $0x7d0] sm:$0xff]
    %v384 = vld [vmem:[#allocation5 + $0x7d8] sm:$0xff]
    %v385 = vld [vmem:[#allocation5 + $0x7e0] sm:$0xff]
    %v386 = vld [vmem:[#allocation5 + $0x7e8] sm:$0xff]
    %v387 = vld [vmem:[#allocation5 + $0x7f0] sm:$0xff]
    %v388 = vld [vmem:[#allocation5 + $0x7f8] sm:$0xff]
    %v389 = vld [vmem:[#allocation5 + $0x800] sm:$0xff]
    %v390 = vld [vmem:[#allocation5 + $0x808] sm:$0xff]
    %v391 = vld [vmem:[#allocation5 + $0x810] sm:$0xff]
    %v392 = vld [vmem:[#allocation5 + $0x818] sm:$0xff]
    %v393 = vld [vmem:[#allocation5 + $0x820] sm:$0xff]
    %v394 = vld [vmem:[#allocation5 + $0x828] sm:$0xff]
    %v395 = vld [vmem:[#allocation5 + $0x830] sm:$0xff]
    %v396 = vld [vmem:[#allocation5 + $0x838] sm:$0xff]
    %v397 = vld [vmem:[#allocation5 + $0x840] sm:$0xff]
    %v398 = vld [vmem:[#allocation5 + $0x848] sm:$0xff]
    %v399 = vld [vmem:[#allocation5 + $0x850] sm:$0xff]
    %v400 = vld [vmem:[#allocation5 + $0x858] sm:$0xff]
    %v401 = vld [vmem:[#allocation5 + $0x860] sm:$0xff]
    %v402 = vld [vmem:[#allocation5 + $0x868] sm:$0xff]
    %v403 = vld [vmem:[#allocation5 + $0x870] sm:$0xff]
    %v404 = vld [vmem:[#allocation5 + $0x878] sm:$0xff]
    %v405 = vld [vmem:[#allocation7] sm:$0xf]
    %v407 = vlaneseq
    %v408 = vshrl.u32 %v407, 7
    %v409 = vsub.s32 0, %v408
    %v410 = vrot.slane %v405, %v409
    %v411 = vlaneseq
    %v412 = vshrl.u32 %v411, 7
    %v413 = vsub.s32 1, %v412
    %v414 = vrot.slane %v405, %v413
    %v415 = vlaneseq
    %v416 = vshrl.u32 %v415, 7
    %v417 = vsub.s32 2, %v416
    %v418 = vrot.slane %v405, %v417
    %v419 = vlaneseq
    %v420 = vshrl.u32 %v419, 7
    %v421 = vsub.s32 3, %v420
    %v422 = vrot.slane %v405, %v421
    %v699 = vunpack.c.l.b16 %v133
    %v700 = vunpack.c.h.b16 %v133
    %v701 = vunpack.c.l.b16 %v134
    %v702 = vunpack.c.h.b16 %v134
    %v703 = vunpack.c.l.b16 %v135
    %v704 = vunpack.c.h.b16 %v135
    %v705 = vunpack.c.l.b16 %v136
    %v706 = vunpack.c.h.b16 %v136
    %v707 = vunpack.c.l.b16 %v137
    %v708 = vunpack.c.h.b16 %v137
    %v709 = vunpack.c.l.b16 %v138
    %v710 = vunpack.c.h.b16 %v138
    %v711 = vunpack.c.l.b16 %v139
    %v712 = vunpack.c.h.b16 %v139
    %v713 = vunpack.c.l.b16 %v140
    %v714 = vunpack.c.h.b16 %v140
    %v715 = vunpack.c.l.b16 %v141
    %v716 = vunpack.c.h.b16 %v141
    %v717 = vunpack.c.l.b16 %v142
    %v718 = vunpack.c.h.b16 %v142
    %v719 = vunpack.c.l.b16 %v143
    %v720 = vunpack.c.h.b16 %v143
    %v721 = vunpack.c.l.b16 %v144
    %v722 = vunpack.c.h.b16 %v144
    %v723 = vunpack.c.l.b16 %v145
    %v724 = vunpack.c.h.b16 %v145
    %v725 = vunpack.c.l.b16 %v146
    %v726 = vunpack.c.h.b16 %v146
    %v727 = vunpack.c.l.b16 %v147
    %v728 = vunpack.c.h.b16 %v147
    %v729 = vunpack.c.l.b16 %v148
    %v730 = vunpack.c.h.b16 %v148
    %v731 = vunpack.c.l.b16 %v149
    %v732 = vunpack.c.h.b16 %v149
    %v733 = vunpack.c.l.b16 %v150
    %v734 = vunpack.c.h.b16 %v150
    %v735 = vunpack.c.l.b16 %v151
    %v736 = vunpack.c.h.b16 %v151
    %v737 = vunpack.c.l.b16 %v152
    %v738 = vunpack.c.h.b16 %v152
    %v739 = vunpack.c.l.b16 %v153
    %v740 = vunpack.c.h.b16 %v153
    %v741 = vunpack.c.l.b16 %v154
    %v742 = vunpack.c.h.b16 %v154
    %v743 = vunpack.c.l.b16 %v155
    %v744 = vunpack.c.h.b16 %v155
    %v745 = vunpack.c.l.b16 %v156
    %v746 = vunpack.c.h.b16 %v156
    %v747 = vunpack.c.l.b16 %v157
    %v748 = vunpack.c.h.b16 %v157
    %v749 = vunpack.c.l.b16 %v158
    %v750 = vunpack.c.h.b16 %v158
    %v751 = vunpack.c.l.b16 %v159
    %v752 = vunpack.c.h.b16 %v159
    %v753 = vunpack.c.l.b16 %v160
    %v754 = vunpack.c.h.b16 %v160
    %v755 = vunpack.c.l.b16 %v161
    %v756 = vunpack.c.h.b16 %v161
    %v757 = vunpack.c.l.b16 %v162
    %v758 = vunpack.c.h.b16 %v162
    %v759 = vunpack.c.l.b16 %v163
    %v760 = vunpack.c.h.b16 %v163
    %v761 = vunpack.c.l.b16 %v164
    %v762 = vunpack.c.h.b16 %v164
    %v763 = vunpack.c.l.b16 %v165
    %v764 = vunpack.c.h.b16 %v165
    %v765 = vunpack.c.l.b16 %v166
    %v766 = vunpack.c.h.b16 %v166
    %v767 = vunpack.c.l.b16 %v167
    %v768 = vunpack.c.h.b16 %v167
    %v769 = vunpack.c.l.b16 %v168
    %v770 = vunpack.c.h.b16 %v168
    %v771 = vunpack.c.l.b16 %v169
    %v772 = vunpack.c.h.b16 %v169
    %v773 = vunpack.c.l.b16 %v170
    %v774 = vunpack.c.h.b16 %v170
    %v775 = vunpack.c.l.b16 %v171
    %v776 = vunpack.c.h.b16 %v171
    %v777 = vunpack.c.l.b16 %v172
    %v778 = vunpack.c.h.b16 %v172
    %v779 = vunpack.c.l.b16 %v173
    %v780 = vunpack.c.h.b16 %v173
    %v781 = vunpack.c.l.b16 %v174
    %v782 = vunpack.c.h.b16 %v174
    %v783 = vunpack.c.l.b16 %v175
    %v784 = vunpack.c.h.b16 %v175
    %v785 = vunpack.c.l.b16 %v176
    %v786 = vunpack.c.h.b16 %v176
    %v787 = vunpack.c.l.b16 %v177
    %v788 = vunpack.c.h.b16 %v177
    %v789 = vunpack.c.l.b16 %v178
    %v790 = vunpack.c.h.b16 %v178
    %v791 = vunpack.c.l.b16 %v179
    %v792 = vunpack.c.h.b16 %v179
    %v793 = vunpack.c.l.b16 %v180
    %v794 = vunpack.c.h.b16 %v180
    %v795 = vunpack.c.l.b16 %v181
    %v796 = vunpack.c.h.b16 %v181
    %v797 = vunpack.c.l.b16 %v182
    %v798 = vunpack.c.h.b16 %v182
    %v799 = vunpack.c.l.b16 %v183
    %v800 = vunpack.c.h.b16 %v183
    %v801 = vunpack.c.l.b16 %v184
    %v802 = vunpack.c.h.b16 %v184
    %v803 = vunpack.c.l.b16 %v185
    %v804 = vunpack.c.h.b16 %v185
    %v805 = vunpack.c.l.b16 %v186
    %v806 = vunpack.c.h.b16 %v186
    %v807 = vunpack.c.l.b16 %v187
    %v808 = vunpack.c.h.b16 %v187
    %v809 = vunpack.c.l.b16 %v188
    %v810 = vunpack.c.h.b16 %v188
    %v811 = vunpack.c.l.b16 %v189
    %v812 = vunpack.c.h.b16 %v189
    %v813 = vunpack.c.l.b16 %v190
    %v814 = vunpack.c.h.b16 %v190
    %v815 = vunpack.c.l.b16 %v191
    %v816 = vunpack.c.h.b16 %v191
    %v817 = vunpack.c.l.b16 %v192
    %v818 = vunpack.c.h.b16 %v192
    %v819 = vunpack.c.l.b16 %v193
    %v820 = vunpack.c.h.b16 %v193
    %v821 = vunpack.c.l.b16 %v194
    %v822 = vunpack.c.h.b16 %v194
    %v823 = vunpack.c.l.b16 %v195
    %v824 = vunpack.c.h.b16 %v195
    %v825 = vunpack.c.l.b16 %v196
    %v826 = vunpack.c.h.b16 %v196
    %v827 = vunpack.c.l.b16 %v197
    %v828 = vunpack.c.h.b16 %v197
    %v829 = vunpack.c.l.b16 %v198
    %v830 = vunpack.c.h.b16 %v198
    %v831 = vunpack.c.l.b16 %v199
    %v832 = vunpack.c.h.b16 %v199
    %v833 = vunpack.c.l.b16 %v200
    %v834 = vunpack.c.h.b16 %v200
    %v835 = vunpack.c.l.b16 %v201
    %v836 = vunpack.c.h.b16 %v201
    %v837 = vunpack.c.l.b16 %v202
    %v838 = vunpack.c.h.b16 %v202
    %v839 = vunpack.c.l.b16 %v203
    %v840 = vunpack.c.h.b16 %v203
    %v841 = vunpack.c.l.b16 %v204
    %v842 = vunpack.c.h.b16 %v204
    %v843 = vunpack.c.l.b16 %v205
    %v844 = vunpack.c.h.b16 %v205
    %v845 = vunpack.c.l.b16 %v206
    %v846 = vunpack.c.h.b16 %v206
    %v847 = vunpack.c.l.b16 %v207
    %v848 = vunpack.c.h.b16 %v207
    %v849 = vunpack.c.l.b16 %v208
    %v850 = vunpack.c.h.b16 %v208
    %v851 = vunpack.c.l.b16 %v209
    %v852 = vunpack.c.h.b16 %v209
    %v853 = vunpack.c.l.b16 %v210
    %v854 = vunpack.c.h.b16 %v210
    %v855 = vunpack.c.l.b16 %v211
    %v856 = vunpack.c.h.b16 %v211
    %v857 = vunpack.c.l.b16 %v212
    %v858 = vunpack.c.h.b16 %v212
    %v859 = vunpack.c.l.b16 %v213
    %v860 = vunpack.c.h.b16 %v213
    %v861 = vunpack.c.l.b16 %v214
    %v862 = vunpack.c.h.b16 %v214
    %v863 = vunpack.c.l.b16 %v215
    %v864 = vunpack.c.h.b16 %v215
    %v865 = vunpack.c.l.b16 %v216
    %v866 = vunpack.c.h.b16 %v216
    %v867 = vunpack.c.l.b16 %v217
    %v868 = vunpack.c.h.b16 %v217
    %v869 = vunpack.c.l.b16 %v218
    %v870 = vunpack.c.h.b16 %v218
    %v871 = vunpack.c.l.b16 %v219
    %v872 = vunpack.c.h.b16 %v219
    %v873 = vunpack.c.l.b16 %v220
    %v874 = vunpack.c.h.b16 %v220
    %v875 = vunpack.c.l.b16 %v221
    %v876 = vunpack.c.h.b16 %v221
    %v877 = vunpack.c.l.b16 %v222
    %v878 = vunpack.c.h.b16 %v222
    %v879 = vunpack.c.l.b16 %v223
    %v880 = vunpack.c.h.b16 %v223
    %v881 = vunpack.c.l.b16 %v224
    %v882 = vunpack.c.h.b16 %v224
    %v883 = vunpack.c.l.b16 %v225
    %v884 = vunpack.c.h.b16 %v225
    %v885 = vunpack.c.l.b16 %v226
    %v886 = vunpack.c.h.b16 %v226
    %v887 = vunpack.c.l.b16 %v227
    %v888 = vunpack.c.h.b16 %v227
    %v889 = vunpack.c.l.b16 %v228
    %v890 = vunpack.c.h.b16 %v228
    %v891 = vunpack.c.l.b16 %v229
    %v892 = vunpack.c.h.b16 %v229
    %v893 = vunpack.c.l.b16 %v230
    %v894 = vunpack.c.h.b16 %v230
    %v895 = vunpack.c.l.b16 %v231
    %v896 = vunpack.c.h.b16 %v231
    %v897 = vunpack.c.l.b16 %v232
    %v898 = vunpack.c.h.b16 %v232
    %v899 = vunpack.c.l.b16 %v233
    %v900 = vunpack.c.h.b16 %v233
    %v901 = vunpack.c.l.b16 %v234
    %v902 = vunpack.c.h.b16 %v234
    %v903 = vunpack.c.l.b16 %v235
    %v904 = vunpack.c.h.b16 %v235
    %v905 = vunpack.c.l.b16 %v236
    %v906 = vunpack.c.h.b16 %v236
    %v907 = vunpack.c.l.b16 %v237
    %v908 = vunpack.c.h.b16 %v237
    %v909 = vunpack.c.l.b16 %v238
    %v910 = vunpack.c.h.b16 %v238
    %v911 = vunpack.c.l.b16 %v239
    %v912 = vunpack.c.h.b16 %v239
    %v913 = vunpack.c.l.b16 %v240
    %v914 = vunpack.c.h.b16 %v240
    %v915 = vunpack.c.l.b16 %v241
    %v916 = vunpack.c.h.b16 %v241
    %v917 = vunpack.c.l.b16 %v242
    %v918 = vunpack.c.h.b16 %v242
    %v919 = vunpack.c.l.b16 %v243
    %v920 = vunpack.c.h.b16 %v243
    %v921 = vunpack.c.l.b16 %v244
    %v922 = vunpack.c.h.b16 %v244
    %v923 = vunpack.c.l.b16 %v245
    %v924 = vunpack.c.h.b16 %v245
    %v925 = vunpack.c.l.b16 %v246
    %v926 = vunpack.c.h.b16 %v246
    %v927 = vunpack.c.l.b16 %v247
    %v928 = vunpack.c.h.b16 %v247
    %v929 = vunpack.c.l.b16 %v248
    %v930 = vunpack.c.h.b16 %v248
    %v931 = vunpack.c.l.b16 %v249
    %v932 = vunpack.c.h.b16 %v249
    %v933 = vunpack.c.l.b16 %v250
    %v934 = vunpack.c.h.b16 %v250
    %v935 = vunpack.c.l.b16 %v251
    %v936 = vunpack.c.h.b16 %v251
    %v937 = vunpack.c.l.b16 %v252
    %v938 = vunpack.c.h.b16 %v252
    %v939 = vunpack.c.l.b16 %v253
    %v940 = vunpack.c.h.b16 %v253
    %v941 = vunpack.c.l.b16 %v254
    %v942 = vunpack.c.h.b16 %v254
    %v943 = vunpack.c.l.b16 %v255
    %v944 = vunpack.c.h.b16 %v255
    %v945 = vunpack.c.l.b16 %v256
    %v946 = vunpack.c.h.b16 %v256
    %v947 = vunpack.c.l.b16 %v257
    %v948 = vunpack.c.h.b16 %v257
    %v949 = vunpack.c.l.b16 %v258
    %v950 = vunpack.c.h.b16 %v258
    %v951 = vunpack.c.l.b16 %v259
    %v952 = vunpack.c.h.b16 %v259
    %v953 = vunpack.c.l.b16 %v260
    %v954 = vunpack.c.h.b16 %v260
    %v955 = vunpack.c.l.b16 %v261
    %v956 = vunpack.c.h.b16 %v261
    %v957 = vunpack.c.l.b16 %v262
    %v958 = vunpack.c.h.b16 %v262
    %v959 = vunpack.c.l.b16 %v263
    %v960 = vunpack.c.h.b16 %v263
    %v961 = vunpack.c.l.b16 %v264
    %v962 = vunpack.c.h.b16 %v264
    %v963 = vunpack.c.l.b16 %v265
    %v964 = vunpack.c.h.b16 %v265
    %v965 = vunpack.c.l.b16 %v266
    %v966 = vunpack.c.h.b16 %v266
    %v967 = vunpack.c.l.b16 %v267
    %v968 = vunpack.c.h.b16 %v267
    %v969 = vunpack.c.l.b16 %v268
    %v970 = vunpack.c.h.b16 %v268
    %v971 = vunpack.c.l.b16 %v269
    %v972 = vunpack.c.h.b16 %v269
    %v973 = vunpack.c.l.b16 %v270
    %v974 = vunpack.c.h.b16 %v270
    %v975 = vunpack.c.l.b16 %v271
    %v976 = vunpack.c.h.b16 %v271
    %v977 = vunpack.c.l.b16 %v272
    %v978 = vunpack.c.h.b16 %v272
    %v979 = vunpack.c.l.b16 %v273
    %v980 = vunpack.c.h.b16 %v273
    %v981 = vunpack.c.l.b16 %v274
    %v982 = vunpack.c.h.b16 %v274
    %v983 = vunpack.c.l.b16 %v275
    %v984 = vunpack.c.h.b16 %v275
    %v985 = vunpack.c.l.b16 %v276
    %v986 = vunpack.c.h.b16 %v276
    %v987 = vunpack.c.l.b16 %v277
    %v988 = vunpack.c.h.b16 %v277
    %v989 = vunpack.c.l.b16 %v278
    %v990 = vunpack.c.h.b16 %v278
    %v991 = vunpack.c.l.b16 %v279
    %v992 = vunpack.c.h.b16 %v279
    %v993 = vunpack.c.l.b16 %v280
    %v994 = vunpack.c.h.b16 %v280
    %v995 = vunpack.c.l.b16 %v281
    %v996 = vunpack.c.h.b16 %v281
    %v997 = vunpack.c.l.b16 %v282
    %v998 = vunpack.c.h.b16 %v282
    %v999 = vunpack.c.l.b16 %v283
    %v1000 = vunpack.c.h.b16 %v283
    %v1001 = vunpack.c.l.b16 %v284
    %v1002 = vunpack.c.h.b16 %v284
    %v1003 = vunpack.c.l.b16 %v285
    %v1004 = vunpack.c.h.b16 %v285
    %v1005 = vunpack.c.l.b16 %v286
    %v1006 = vunpack.c.h.b16 %v286
    %v1007 = vunpack.c.l.b16 %v287
    %v1008 = vunpack.c.h.b16 %v287
    %v1009 = vunpack.c.l.b16 %v288
    %v1010 = vunpack.c.h.b16 %v288
    %v1011 = vunpack.c.l.b16 %v289
    %v1012 = vunpack.c.h.b16 %v289
    %v1013 = vunpack.c.l.b16 %v290
    %v1014 = vunpack.c.h.b16 %v290
    %v1015 = vunpack.c.l.b16 %v291
    %v1016 = vunpack.c.h.b16 %v291
    %v1017 = vunpack.c.l.b16 %v292
    %v1018 = vunpack.c.h.b16 %v292
    %v1019 = vunpack.c.l.b16 %v293
    %v1020 = vunpack.c.h.b16 %v293
    %v1021 = vunpack.c.l.b16 %v294
    %v1022 = vunpack.c.h.b16 %v294
    %v1023 = vunpack.c.l.b16 %v295
    %v1024 = vunpack.c.h.b16 %v295
    %v1025 = vunpack.c.l.b16 %v296
    %v1026 = vunpack.c.h.b16 %v296
    %v1027 = vunpack.c.l.b16 %v297
    %v1028 = vunpack.c.h.b16 %v297
    %v1029 = vunpack.c.l.b16 %v298
    %v1030 = vunpack.c.h.b16 %v298
    %v1031 = vunpack.c.l.b16 %v299
    %v1032 = vunpack.c.h.b16 %v299
    %v1033 = vunpack.c.l.b16 %v300
    %v1034 = vunpack.c.h.b16 %v300
    %v1035 = vunpack.c.l.b16 %v301
    %v1036 = vunpack.c.h.b16 %v301
    %v1037 = vunpack.c.l.b16 %v302
    %v1038 = vunpack.c.h.b16 %v302
    %v1039 = vunpack.c.l.b16 %v303
    %v1040 = vunpack.c.h.b16 %v303
    %v1041 = vunpack.c.l.b16 %v304
    %v1042 = vunpack.c.h.b16 %v304
    %v1043 = vunpack.c.l.b16 %v305
    %v1044 = vunpack.c.h.b16 %v305
    %v1045 = vunpack.c.l.b16 %v306
    %v1046 = vunpack.c.h.b16 %v306
    %v1047 = vunpack.c.l.b16 %v307
    %v1048 = vunpack.c.h.b16 %v307
    %v1049 = vunpack.c.l.b16 %v308
    %v1050 = vunpack.c.h.b16 %v308
    %v1051 = vunpack.c.l.b16 %v309
    %v1052 = vunpack.c.h.b16 %v309
    %v1053 = vunpack.c.l.b16 %v310
    %v1054 = vunpack.c.h.b16 %v310
    %v1055 = vunpack.c.l.b16 %v311
    %v1056 = vunpack.c.h.b16 %v311
    %v1057 = vunpack.c.l.b16 %v312
    %v1058 = vunpack.c.h.b16 %v312
    %v1059 = vunpack.c.l.b16 %v313
    %v1060 = vunpack.c.h.b16 %v313
    %v1061 = vunpack.c.l.b16 %v314
    %v1062 = vunpack.c.h.b16 %v314
    %v1063 = vunpack.c.l.b16 %v315
    %v1064 = vunpack.c.h.b16 %v315
    %v1065 = vunpack.c.l.b16 %v316
    %v1066 = vunpack.c.h.b16 %v316
    %v1067 = vunpack.c.l.b16 %v317
    %v1068 = vunpack.c.h.b16 %v317
    %v1069 = vunpack.c.l.b16 %v318
    %v1070 = vunpack.c.h.b16 %v318
    %v1071 = vunpack.c.l.b16 %v319
    %v1072 = vunpack.c.h.b16 %v319
    %v1073 = vunpack.c.l.b16 %v320
    %v1074 = vunpack.c.h.b16 %v320
    %v1075 = vunpack.c.l.b16 %v321
    %v1076 = vunpack.c.h.b16 %v321
    %v1077 = vunpack.c.l.b16 %v322
    %v1078 = vunpack.c.h.b16 %v322
    %v1079 = vunpack.c.l.b16 %v323
    %v1080 = vunpack.c.h.b16 %v323
    %v1081 = vunpack.c.l.b16 %v324
    %v1082 = vunpack.c.h.b16 %v324
    %v1083 = vunpack.c.l.b16 %v325
    %v1084 = vunpack.c.h.b16 %v325
    %v1085 = vunpack.c.l.b16 %v326
    %v1086 = vunpack.c.h.b16 %v326
    %v1087 = vunpack.c.l.b16 %v327
    %v1088 = vunpack.c.h.b16 %v327
    %v1089 = vunpack.c.l.b16 %v328
    %v1090 = vunpack.c.h.b16 %v328
    %v1091 = vunpack.c.l.b16 %v329
    %v1092 = vunpack.c.h.b16 %v329
    %v1093 = vunpack.c.l.b16 %v330
    %v1094 = vunpack.c.h.b16 %v330
    %v1095 = vunpack.c.l.b16 %v331
    %v1096 = vunpack.c.h.b16 %v331
    %v1097 = vunpack.c.l.b16 %v332
    %v1098 = vunpack.c.h.b16 %v332
    %v1099 = vunpack.c.l.b16 %v333
    %v1100 = vunpack.c.h.b16 %v333
    %v1101 = vunpack.c.l.b16 %v334
    %v1102 = vunpack.c.h.b16 %v334
    %v1103 = vunpack.c.l.b16 %v335
    %v1104 = vunpack.c.h.b16 %v335
    %v1105 = vunpack.c.l.b16 %v336
    %v1106 = vunpack.c.h.b16 %v336
    %v1107 = vunpack.c.l.b16 %v337
    %v1108 = vunpack.c.h.b16 %v337
    %v1109 = vunpack.c.l.b16 %v338
    %v1110 = vunpack.c.h.b16 %v338
    %v1111 = vunpack.c.l.b16 %v339
    %v1112 = vunpack.c.h.b16 %v339
    %v1113 = vunpack.c.l.b16 %v340
    %v1114 = vunpack.c.h.b16 %v340
    %v1115 = vunpack.c.l.b16 %v341
    %v1116 = vunpack.c.h.b16 %v341
    %v1117 = vunpack.c.l.b16 %v342
    %v1118 = vunpack.c.h.b16 %v342
    %v1119 = vunpack.c.l.b16 %v343
    %v1120 = vunpack.c.h.b16 %v343
    %v1121 = vunpack.c.l.b16 %v344
    %v1122 = vunpack.c.h.b16 %v344
    %v1123 = vunpack.c.l.b16 %v345
    %v1124 = vunpack.c.h.b16 %v345
    %v1125 = vunpack.c.l.b16 %v346
    %v1126 = vunpack.c.h.b16 %v346
    %v1127 = vunpack.c.l.b16 %v347
    %v1128 = vunpack.c.h.b16 %v347
    %v1129 = vunpack.c.l.b16 %v348
    %v1130 = vunpack.c.h.b16 %v348
    %v1131 = vunpack.c.l.b16 %v349
    %v1132 = vunpack.c.h.b16 %v349
    %v1133 = vunpack.c.l.b16 %v350
    %v1134 = vunpack.c.h.b16 %v350
    %v1135 = vunpack.c.l.b16 %v351
    %v1136 = vunpack.c.h.b16 %v351
    %v1137 = vunpack.c.l.b16 %v352
    %v1138 = vunpack.c.h.b16 %v352
    %v1139 = vunpack.c.l.b16 %v353
    %v1140 = vunpack.c.h.b16 %v353
    %v1141 = vunpack.c.l.b16 %v354
    %v1142 = vunpack.c.h.b16 %v354
    %v1143 = vunpack.c.l.b16 %v355
    %v1144 = vunpack.c.h.b16 %v355
    %v1145 = vunpack.c.l.b16 %v356
    %v1146 = vunpack.c.h.b16 %v356
    %v1147 = vunpack.c.l.b16 %v357
    %v1148 = vunpack.c.h.b16 %v357
    %v1149 = vunpack.c.l.b16 %v358
    %v1150 = vunpack.c.h.b16 %v358
    %v1151 = vunpack.c.l.b16 %v359
    %v1152 = vunpack.c.h.b16 %v359
    %v1153 = vunpack.c.l.b16 %v360
    %v1154 = vunpack.c.h.b16 %v360
    %v1155 = vunpack.c.l.b16 %v361
    %v1156 = vunpack.c.h.b16 %v361
    %v1157 = vunpack.c.l.b16 %v362
    %v1158 = vunpack.c.h.b16 %v362
    %v1159 = vunpack.c.l.b16 %v363
    %v1160 = vunpack.c.h.b16 %v363
    %v1161 = vunpack.c.l.b16 %v364
    %v1162 = vunpack.c.h.b16 %v364
    %v1163 = vunpack.c.l.b16 %v365
    %v1164 = vunpack.c.h.b16 %v365
    %v1165 = vunpack.c.l.b16 %v366
    %v1166 = vunpack.c.h.b16 %v366
    %v1167 = vunpack.c.l.b16 %v367
    %v1168 = vunpack.c.h.b16 %v367
    %v1169 = vunpack.c.l.b16 %v368
    %v1170 = vunpack.c.h.b16 %v368
    %v1171 = vunpack.c.l.b16 %v369
    %v1172 = vunpack.c.h.b16 %v369
    %v1173 = vunpack.c.l.b16 %v370
    %v1174 = vunpack.c.h.b16 %v370
    %v1175 = vunpack.c.l.b16 %v371
    %v1176 = vunpack.c.h.b16 %v371
    %v1177 = vunpack.c.l.b16 %v372
    %v1178 = vunpack.c.h.b16 %v372
    %v1179 = vunpack.c.l.b16 %v373
    %v1180 = vunpack.c.h.b16 %v373
    %v1181 = vunpack.c.l.b16 %v374
    %v1182 = vunpack.c.h.b16 %v374
    %v1183 = vunpack.c.l.b16 %v375
    %v1184 = vunpack.c.h.b16 %v375
    %v1185 = vunpack.c.l.b16 %v376
    %v1186 = vunpack.c.h.b16 %v376
    %v1187 = vunpack.c.l.b16 %v377
    %v1188 = vunpack.c.h.b16 %v377
    %v1189 = vunpack.c.l.b16 %v378
    %v1190 = vunpack.c.h.b16 %v378
    %v1191 = vunpack.c.l.b16 %v379
    %v1192 = vunpack.c.h.b16 %v379
    %v1193 = vunpack.c.l.b16 %v380
    %v1194 = vunpack.c.h.b16 %v380
    %v1195 = vunpack.c.l.b16 %v381
    %v1196 = vunpack.c.h.b16 %v381
    %v1197 = vunpack.c.l.b16 %v382
    %v1198 = vunpack.c.h.b16 %v382
    %v1199 = vunpack.c.l.b16 %v383
    %v1200 = vunpack.c.h.b16 %v383
    %v1201 = vunpack.c.l.b16 %v384
    %v1202 = vunpack.c.h.b16 %v384
    %v1203 = vunpack.c.l.b16 %v385
    %v1204 = vunpack.c.h.b16 %v385
    %v1205 = vunpack.c.l.b16 %v386
    %v1206 = vunpack.c.h.b16 %v386
    %v1207 = vunpack.c.l.b16 %v387
    %v1208 = vunpack.c.h.b16 %v387
    %v1209 = vunpack.c.l.b16 %v388
    %v1210 = vunpack.c.h.b16 %v388
    %v1211 = vunpack.c.l.b16 %v389
    %v1212 = vunpack.c.h.b16 %v389
    %v1213 = vunpack.c.l.b16 %v390
    %v1214 = vunpack.c.h.b16 %v390
    %v1215 = vunpack.c.l.b16 %v391
    %v1216 = vunpack.c.h.b16 %v391
    %v1217 = vunpack.c.l.b16 %v392
    %v1218 = vunpack.c.h.b16 %v392
    %v1219 = vunpack.c.l.b16 %v393
    %v1220 = vunpack.c.h.b16 %v393
    %v1221 = vunpack.c.l.b16 %v394
    %v1222 = vunpack.c.h.b16 %v394
    %v1223 = vunpack.c.l.b16 %v395
    %v1224 = vunpack.c.h.b16 %v395
    %v1225 = vunpack.c.l.b16 %v396
    %v1226 = vunpack.c.h.b16 %v396
    %v1227 = vunpack.c.l.b16 %v397
    %v1228 = vunpack.c.h.b16 %v397
    %v1229 = vunpack.c.l.b16 %v398
    %v1230 = vunpack.c.h.b16 %v398
    %v1231 = vunpack.c.l.b16 %v399
    %v1232 = vunpack.c.h.b16 %v399
    %v1233 = vunpack.c.l.b16 %v400
    %v1234 = vunpack.c.h.b16 %v400
    %v1235 = vunpack.c.l.b16 %v401
    %v1236 = vunpack.c.h.b16 %v401
    %v1237 = vunpack.c.l.b16 %v402
    %v1238 = vunpack.c.h.b16 %v402
    %v1239 = vunpack.c.l.b16 %v403
    %v1240 = vunpack.c.h.b16 %v403
    %v1241 = vunpack.c.l.b16 %v404
    %v1242 = vunpack.c.h.b16 %v404
    %v1243 = vpack.c.b16 %v703, %v699
    %v1244 = vpack.c.b16 %v704, %v700
    %v1245 = vpack.c.b16 %v705, %v701
    %v1246 = vpack.c.b16 %v706, %v702
    %v1247 = vpack.c.b16 %v711, %v707
    %v1248 = vpack.c.b16 %v712, %v708
    %v1249 = vpack.c.b16 %v713, %v709
    %v1250 = vpack.c.b16 %v714, %v710
    %v1251 = vpack.c.b16 %v719, %v715
    %v1252 = vpack.c.b16 %v720, %v716
    %v1253 = vpack.c.b16 %v721, %v717
    %v1254 = vpack.c.b16 %v722, %v718
    %v1255 = vpack.c.b16 %v727, %v723
    %v1256 = vpack.c.b16 %v728, %v724
    %v1257 = vpack.c.b16 %v729, %v725
    %v1258 = vpack.c.b16 %v730, %v726
    %v1259 = vpack.c.b16 %v735, %v731
    %v1260 = vpack.c.b16 %v736, %v732
    %v1261 = vpack.c.b16 %v737, %v733
    %v1262 = vpack.c.b16 %v738, %v734
    %v1263 = vpack.c.b16 %v743, %v739
    %v1264 = vpack.c.b16 %v744, %v740
    %v1265 = vpack.c.b16 %v745, %v741
    %v1266 = vpack.c.b16 %v746, %v742
    %v1267 = vpack.c.b16 %v751, %v747
    %v1268 = vpack.c.b16 %v752, %v748
    %v1269 = vpack.c.b16 %v753, %v749
    %v1270 = vpack.c.b16 %v754, %v750
    %v1271 = vpack.c.b16 %v759, %v755
    %v1272 = vpack.c.b16 %v760, %v756
    %v1273 = vpack.c.b16 %v761, %v757
    %v1274 = vpack.c.b16 %v762, %v758
    %v1275 = vpack.c.b16 %v767, %v763
    %v1276 = vpack.c.b16 %v768, %v764
    %v1277 = vpack.c.b16 %v769, %v765
    %v1278 = vpack.c.b16 %v770, %v766
    %v1279 = vpack.c.b16 %v775, %v771
    %v1280 = vpack.c.b16 %v776, %v772
    %v1281 = vpack.c.b16 %v777, %v773
    %v1282 = vpack.c.b16 %v778, %v774
    %v1283 = vpack.c.b16 %v783, %v779
    %v1284 = vpack.c.b16 %v784, %v780
    %v1285 = vpack.c.b16 %v785, %v781
    %v1286 = vpack.c.b16 %v786, %v782
    %v1287 = vpack.c.b16 %v791, %v787
    %v1288 = vpack.c.b16 %v792, %v788
    %v1289 = vpack.c.b16 %v793, %v789
    %v1290 = vpack.c.b16 %v794, %v790
    %v1291 = vpack.c.b16 %v799, %v795
    %v1292 = vpack.c.b16 %v800, %v796
    %v1293 = vpack.c.b16 %v801, %v797
    %v1294 = vpack.c.b16 %v802, %v798
    %v1295 = vpack.c.b16 %v807, %v803
    %v1296 = vpack.c.b16 %v808, %v804
    %v1297 = vpack.c.b16 %v809, %v805
    %v1298 = vpack.c.b16 %v810, %v806
    %v1299 = vpack.c.b16 %v815, %v811
    %v1300 = vpack.c.b16 %v816, %v812
    %v1301 = vpack.c.b16 %v817, %v813
    %v1302 = vpack.c.b16 %v818, %v814
    %v1303 = vpack.c.b16 %v823, %v819
    %v1304 = vpack.c.b16 %v824, %v820
    %v1305 = vpack.c.b16 %v825, %v821
    %v1306 = vpack.c.b16 %v826, %v822
    %v1307 = vpack.c.b16 %v831, %v827
    %v1308 = vpack.c.b16 %v832, %v828
    %v1309 = vpack.c.b16 %v833, %v829
    %v1310 = vpack.c.b16 %v834, %v830
    %v1311 = vpack.c.b16 %v839, %v835
    %v1312 = vpack.c.b16 %v840, %v836
    %v1313 = vpack.c.b16 %v841, %v837
    %v1314 = vpack.c.b16 %v842, %v838
    %v1315 = vpack.c.b16 %v847, %v843
    %v1316 = vpack.c.b16 %v848, %v844
    %v1317 = vpack.c.b16 %v849, %v845
    %v1318 = vpack.c.b16 %v850, %v846
    %v1319 = vpack.c.b16 %v855, %v851
    %v1320 = vpack.c.b16 %v856, %v852
    %v1321 = vpack.c.b16 %v857, %v853
    %v1322 = vpack.c.b16 %v858, %v854
    %v1323 = vpack.c.b16 %v863, %v859
    %v1324 = vpack.c.b16 %v864, %v860
    %v1325 = vpack.c.b16 %v865, %v861
    %v1326 = vpack.c.b16 %v866, %v862
    %v1327 = vpack.c.b16 %v871, %v867
    %v1328 = vpack.c.b16 %v872, %v868
    %v1329 = vpack.c.b16 %v873, %v869
    %v1330 = vpack.c.b16 %v874, %v870
    %v1331 = vpack.c.b16 %v879, %v875
    %v1332 = vpack.c.b16 %v880, %v876
    %v1333 = vpack.c.b16 %v881, %v877
    %v1334 = vpack.c.b16 %v882, %v878
    %v1335 = vpack.c.b16 %v887, %v883
    %v1336 = vpack.c.b16 %v888, %v884
    %v1337 = vpack.c.b16 %v889, %v885
    %v1338 = vpack.c.b16 %v890, %v886
    %v1339 = vpack.c.b16 %v895, %v891
    %v1340 = vpack.c.b16 %v896, %v892
    %v1341 = vpack.c.b16 %v897, %v893
    %v1342 = vpack.c.b16 %v898, %v894
    %v1343 = vpack.c.b16 %v903, %v899
    %v1344 = vpack.c.b16 %v904, %v900
    %v1345 = vpack.c.b16 %v905, %v901
    %v1346 = vpack.c.b16 %v906, %v902
    %v1347 = vpack.c.b16 %v911, %v907
    %v1348 = vpack.c.b16 %v912, %v908
    %v1349 = vpack.c.b16 %v913, %v909
    %v1350 = vpack.c.b16 %v914, %v910
    %v1351 = vpack.c.b16 %v919, %v915
    %v1352 = vpack.c.b16 %v920, %v916
    %v1353 = vpack.c.b16 %v921, %v917
    %v1354 = vpack.c.b16 %v922, %v918
    %v1355 = vpack.c.b16 %v927, %v923
    %v1356 = vpack.c.b16 %v928, %v924
    %v1357 = vpack.c.b16 %v929, %v925
    %v1358 = vpack.c.b16 %v930, %v926
    %v1359 = vpack.c.b16 %v935, %v931
    %v1360 = vpack.c.b16 %v936, %v932
    %v1361 = vpack.c.b16 %v937, %v933
    %v1362 = vpack.c.b16 %v938, %v934
    %v1363 = vpack.c.b16 %v943, %v939
    %v1364 = vpack.c.b16 %v944, %v940
    %v1365 = vpack.c.b16 %v945, %v941
    %v1366 = vpack.c.b16 %v946, %v942
    %v1367 = vpack.c.b16 %v951, %v947
    %v1368 = vpack.c.b16 %v952, %v948
    %v1369 = vpack.c.b16 %v953, %v949
    %v1370 = vpack.c.b16 %v954, %v950
    %v1371 = vpack.c.b16 %v959, %v955
    %v1372 = vpack.c.b16 %v960, %v956
    %v1373 = vpack.c.b16 %v961, %v957
    %v1374 = vpack.c.b16 %v962, %v958
    %v1375 = vpack.c.b16 %v967, %v963
    %v1376 = vpack.c.b16 %v968, %v964
    %v1377 = vpack.c.b16 %v969, %v965
    %v1378 = vpack.c.b16 %v970, %v966
    %v1379 = vpack.c.b16 %v975, %v971
    %v1380 = vpack.c.b16 %v976, %v972
    %v1381 = vpack.c.b16 %v977, %v973
    %v1382 = vpack.c.b16 %v978, %v974
    %v1383 = vpack.c.b16 %v983, %v979
    %v1384 = vpack.c.b16 %v984, %v980
    %v1385 = vpack.c.b16 %v985, %v981
    %v1386 = vpack.c.b16 %v986, %v982
    %v1387 = vpack.c.b16 %v991, %v987
    %v1388 = vpack.c.b16 %v992, %v988
    %v1389 = vpack.c.b16 %v993, %v989
    %v1390 = vpack.c.b16 %v994, %v990
    %v1391 = vpack.c.b16 %v999, %v995
    %v1392 = vpack.c.b16 %v1000, %v996
    %v1393 = vpack.c.b16 %v1001, %v997
    %v1394 = vpack.c.b16 %v1002, %v998
    %v1395 = vpack.c.b16 %v1007, %v1003
    %v1396 = vpack.c.b16 %v1008, %v1004
    %v1397 = vpack.c.b16 %v1009, %v1005
    %v1398 = vpack.c.b16 %v1010, %v1006
    %v1399 = vpack.c.b16 %v1015, %v1011
    %v1400 = vpack.c.b16 %v1016, %v1012
    %v1401 = vpack.c.b16 %v1017, %v1013
    %v1402 = vpack.c.b16 %v1018, %v1014
    %v1403 = vpack.c.b16 %v1023, %v1019
    %v1404 = vpack.c.b16 %v1024, %v1020
    %v1405 = vpack.c.b16 %v1025, %v1021
    %v1406 = vpack.c.b16 %v1026, %v1022
    %v1407 = vpack.c.b16 %v1031, %v1027
    %v1408 = vpack.c.b16 %v1032, %v1028
    %v1409 = vpack.c.b16 %v1033, %v1029
    %v1410 = vpack.c.b16 %v1034, %v1030
    %v1411 = vpack.c.b16 %v1039, %v1035
    %v1412 = vpack.c.b16 %v1040, %v1036
    %v1413 = vpack.c.b16 %v1041, %v1037
    %v1414 = vpack.c.b16 %v1042, %v1038
    %v1415 = vpack.c.b16 %v1047, %v1043
    %v1416 = vpack.c.b16 %v1048, %v1044
    %v1417 = vpack.c.b16 %v1049, %v1045
    %v1418 = vpack.c.b16 %v1050, %v1046
    %v1419 = vpack.c.b16 %v1055, %v1051
    %v1420 = vpack.c.b16 %v1056, %v1052
    %v1421 = vpack.c.b16 %v1057, %v1053
    %v1422 = vpack.c.b16 %v1058, %v1054
    %v1423 = vpack.c.b16 %v1063, %v1059
    %v1424 = vpack.c.b16 %v1064, %v1060
    %v1425 = vpack.c.b16 %v1065, %v1061
    %v1426 = vpack.c.b16 %v1066, %v1062
    %v1427 = vpack.c.b16 %v1071, %v1067
    %v1428 = vpack.c.b16 %v1072, %v1068
    %v1429 = vpack.c.b16 %v1073, %v1069
    %v1430 = vpack.c.b16 %v1074, %v1070
    %v1431 = vpack.c.b16 %v1079, %v1075
    %v1432 = vpack.c.b16 %v1080, %v1076
    %v1433 = vpack.c.b16 %v1081, %v1077
    %v1434 = vpack.c.b16 %v1082, %v1078
    %v1435 = vpack.c.b16 %v1087, %v1083
    %v1436 = vpack.c.b16 %v1088, %v1084
    %v1437 = vpack.c.b16 %v1089, %v1085
    %v1438 = vpack.c.b16 %v1090, %v1086
    %v1439 = vpack.c.b16 %v1095, %v1091
    %v1440 = vpack.c.b16 %v1096, %v1092
    %v1441 = vpack.c.b16 %v1097, %v1093
    %v1442 = vpack.c.b16 %v1098, %v1094
    %v1443 = vpack.c.b16 %v1103, %v1099
    %v1444 = vpack.c.b16 %v1104, %v1100
    %v1445 = vpack.c.b16 %v1105, %v1101
    %v1446 = vpack.c.b16 %v1106, %v1102
    %v1447 = vpack.c.b16 %v1111, %v1107
    %v1448 = vpack.c.b16 %v1112, %v1108
    %v1449 = vpack.c.b16 %v1113, %v1109
    %v1450 = vpack.c.b16 %v1114, %v1110
    %v1451 = vpack.c.b16 %v1119, %v1115
    %v1452 = vpack.c.b16 %v1120, %v1116
    %v1453 = vpack.c.b16 %v1121, %v1117
    %v1454 = vpack.c.b16 %v1122, %v1118
    %v1455 = vpack.c.b16 %v1127, %v1123
    %v1456 = vpack.c.b16 %v1128, %v1124
    %v1457 = vpack.c.b16 %v1129, %v1125
    %v1458 = vpack.c.b16 %v1130, %v1126
    %v1459 = vpack.c.b16 %v1135, %v1131
    %v1460 = vpack.c.b16 %v1136, %v1132
    %v1461 = vpack.c.b16 %v1137, %v1133
    %v1462 = vpack.c.b16 %v1138, %v1134
    %v1463 = vpack.c.b16 %v1143, %v1139
    %v1464 = vpack.c.b16 %v1144, %v1140
    %v1465 = vpack.c.b16 %v1145, %v1141
    %v1466 = vpack.c.b16 %v1146, %v1142
    %v1467 = vpack.c.b16 %v1151, %v1147
    %v1468 = vpack.c.b16 %v1152, %v1148
    %v1469 = vpack.c.b16 %v1153, %v1149
    %v1470 = vpack.c.b16 %v1154, %v1150
    %v1471 = vpack.c.b16 %v1159, %v1155
    %v1472 = vpack.c.b16 %v1160, %v1156
    %v1473 = vpack.c.b16 %v1161, %v1157
    %v1474 = vpack.c.b16 %v1162, %v1158
    %v1475 = vpack.c.b16 %v1167, %v1163
    %v1476 = vpack.c.b16 %v1168, %v1164
    %v1477 = vpack.c.b16 %v1169, %v1165
    %v1478 = vpack.c.b16 %v1170, %v1166
    %v1479 = vpack.c.b16 %v1175, %v1171
    %v1480 = vpack.c.b16 %v1176, %v1172
    %v1481 = vpack.c.b16 %v1177, %v1173
    %v1482 = vpack.c.b16 %v1178, %v1174
    %v1483 = vpack.c.b16 %v1183, %v1179
    %v1484 = vpack.c.b16 %v1184, %v1180
    %v1485 = vpack.c.b16 %v1185, %v1181
    %v1486 = vpack.c.b16 %v1186, %v1182
    %v1487 = vpack.c.b16 %v1191, %v1187
    %v1488 = vpack.c.b16 %v1192, %v1188
    %v1489 = vpack.c.b16 %v1193, %v1189
    %v1490 = vpack.c.b16 %v1194, %v1190
    %v1491 = vpack.c.b16 %v1199, %v1195
    %v1492 = vpack.c.b16 %v1200, %v1196
    %v1493 = vpack.c.b16 %v1201, %v1197
    %v1494 = vpack.c.b16 %v1202, %v1198
    %v1495 = vpack.c.b16 %v1207, %v1203
    %v1496 = vpack.c.b16 %v1208, %v1204
    %v1497 = vpack.c.b16 %v1209, %v1205
    %v1498 = vpack.c.b16 %v1210, %v1206
    %v1499 = vpack.c.b16 %v1215, %v1211
    %v1500 = vpack.c.b16 %v1216, %v1212
    %v1501 = vpack.c.b16 %v1217, %v1213
    %v1502 = vpack.c.b16 %v1218, %v1214
    %v1503 = vpack.c.b16 %v1223, %v1219
    %v1504 = vpack.c.b16 %v1224, %v1220
    %v1505 = vpack.c.b16 %v1225, %v1221
    %v1506 = vpack.c.b16 %v1226, %v1222
    %v1507 = vpack.c.b16 %v1231, %v1227
    %v1508 = vpack.c.b16 %v1232, %v1228
    %v1509 = vpack.c.b16 %v1233, %v1229
    %v1510 = vpack.c.b16 %v1234, %v1230
    %v1511 = vpack.c.b16 %v1239, %v1235
    %v1512 = vpack.c.b16 %v1240, %v1236
    %v1513 = vpack.c.b16 %v1241, %v1237
    %v1514 = vpack.c.b16 %v1242, %v1238
    %vm1787 = vcmask 523264
    %v1789 = vsel %vm1787, %v132, 0
    %1791 = vmatprep.subr.bf16.mxu0 %v1272
    %1792 = vmatpush1.bf16.msra.mxu0 %v1271
    %1793 = vmatprep.subr.bf16.mxu0 %v1268
    %1794 = vmatpush1.bf16.msra.mxu0 %v1267
    %1795 = vmatprep.subr.bf16.mxu0 %v1264
    %1796 = vmatpush1.bf16.msra.mxu0 %v1263
    %1797 = vmatprep.subr.bf16.mxu0 %v1260
    %1798 = vmatpush1.bf16.msra.mxu0 %v1259
    %1799 = vmatprep.subr.bf16.mxu0 %v1256
    %1800 = vmatpush1.bf16.msra.mxu0 %v1255
    %1801 = vmatprep.subr.bf16.mxu0 %v1252
    %1802 = vmatpush1.bf16.msra.mxu0 %v1251
    %1803 = vmatprep.subr.bf16.mxu0 %v1248
    %1804 = vmatpush1.bf16.msra.mxu0 %v1247
    %1805 = vmatprep.subr.bf16.mxu0 %v1244
    %1806 = vmatpush1.bf16.msra.mxu0 %v1243
    %1807 = vmatprep.subr.bf16.mxu0 %v1304
    %1808 = vmatpush2.bf16.msra.mxu0 %v1303
    %1809 = vmatprep.subr.bf16.mxu0 %v1300
    %1810 = vmatpush2.bf16.msra.mxu0 %v1299
    %1811 = vmatprep.subr.bf16.mxu0 %v1296
    %1812 = vmatpush2.bf16.msra.mxu0 %v1295
    %1813 = vmatprep.subr.bf16.mxu0 %v1292
    %1814 = vmatpush2.bf16.msra.mxu0 %v1291
    %1815 = vmatprep.subr.bf16.mxu0 %v1288
    %1816 = vmatpush2.bf16.msra.mxu0 %v1287
    %1817 = vmatprep.subr.bf16.mxu0 %v1284
    %1818 = vmatpush2.bf16.msra.mxu0 %v1283
    %1819 = vmatprep.subr.bf16.mxu0 %v1280
    %1820 = vmatpush2.bf16.msra.mxu0 %v1279
    %1821 = vmatprep.subr.bf16.mxu0 %v1276
    %1822 = vmatpush2.bf16.msra.mxu0 %v1275
    %1823 = vmatprep.mubr.bf16.mxu0 %v125
    %1824 = vmatmul.mubr.bf16.gmra.mxu0 %v124
    %v1825 = vpop.f32.mrf.mxu0
    %v1826 = vadd.f32 %v410, %v1825
    %v1827 = vpop.f32.mrf.mxu0
    %v1828 = vadd.f32 %v414, %v1827
    %v1829 = vpop.f32.mrf.mxu0
    %v1830 = vpop.f32.mrf.mxu0
    %1831 = vdwg.mxu0
    %1832 = vmatprep.subr.bf16.mxu0 %v1336
    %1833 = vmatpush1.bf16.msra.mxu0 %v1335
    %1834 = vmatprep.subr.bf16.mxu0 %v1332
    %1835 = vmatpush1.bf16.msra.mxu0 %v1331
    %1836 = vmatprep.subr.bf16.mxu0 %v1328
    %1837 = vmatpush1.bf16.msra.mxu0 %v1327
    %1838 = vmatprep.subr.bf16.mxu0 %v1324
    %1839 = vmatpush1.bf16.msra.mxu0 %v1323
    %1840 = vmatprep.subr.bf16.mxu0 %v1320
    %1841 = vmatpush1.bf16.msra.mxu0 %v1319
    %1842 = vmatprep.subr.bf16.mxu0 %v1316
    %1843 = vmatpush1.bf16.msra.mxu0 %v1315
    %1844 = vmatprep.subr.bf16.mxu0 %v1312
    %1845 = vmatpush1.bf16.msra.mxu0 %v1311
    %1846 = vmatprep.subr.bf16.mxu0 %v1308
    %1847 = vmatpush1.bf16.msra.mxu0 %v1307
    %1848 = vmatprep.subr.bf16.mxu0 %v1368
    %1849 = vmatpush2.bf16.msra.mxu0 %v1367
    %1850 = vmatprep.subr.bf16.mxu0 %v1364
    %1851 = vmatpush2.bf16.msra.mxu0 %v1363
    %1852 = vmatprep.subr.bf16.mxu0 %v1360
    %1853 = vmatpush2.bf16.msra.mxu0 %v1359
    %1854 = vmatprep.subr.bf16.mxu0 %v1356
    %1855 = vmatpush2.bf16.msra.mxu0 %v1355
    %1856 = vmatprep.subr.bf16.mxu0 %v1352
    %1857 = vmatpush2.bf16.msra.mxu0 %v1351
    %1858 = vmatprep.subr.bf16.mxu0 %v1348
    %1859 = vmatpush2.bf16.msra.mxu0 %v1347
    %1860 = vmatprep.subr.bf16.mxu0 %v1344
    %1861 = vmatpush2.bf16.msra.mxu0 %v1343
    %1862 = vmatprep.subr.bf16.mxu0 %v1340
    %1863 = vmatpush2.bf16.msra.mxu0 %v1339
    %1864 = vmatprep.mubr.bf16.mxu0 %v127
    %1865 = vmatmul.mubr.bf16.gmra.mxu0 %v126
    %v1866 = vpop.f32.mrf.mxu0
    %v1867 = vadd.f32 %v1826, %v1866
    %v1868 = vpop.f32.mrf.mxu0
    %v1869 = vadd.f32 %v1828, %v1868
    %v1870 = vpop.f32.mrf.mxu0
    %v1871 = vpop.f32.mrf.mxu0
    %1872 = vdwg.mxu0
    %1873 = vmatprep.subr.bf16.mxu0 %v1400
    %1874 = vmatpush1.bf16.msra.mxu0 %v1399
    %1875 = vmatprep.subr.bf16.mxu0 %v1396
    %1876 = vmatpush1.bf16.msra.mxu0 %v1395
    %1877 = vmatprep.subr.bf16.mxu0 %v1392
    %1878 = vmatpush1.bf16.msra.mxu0 %v1391
    %1879 = vmatprep.subr.bf16.mxu0 %v1388
    %1880 = vmatpush1.bf16.msra.mxu0 %v1387
    %1881 = vmatprep.subr.bf16.mxu0 %v1384
    %1882 = vmatpush1.bf16.msra.mxu0 %v1383
    %1883 = vmatprep.subr.bf16.mxu0 %v1380
    %1884 = vmatpush1.bf16.msra.mxu0 %v1379
    %1885 = vmatprep.subr.bf16.mxu0 %v1376
    %1886 = vmatpush1.bf16.msra.mxu0 %v1375
    %1887 = vmatprep.subr.bf16.mxu0 %v1372
    %1888 = vmatpush1.bf16.msra.mxu0 %v1371
    %1889 = vmatprep.subr.bf16.mxu0 %v1432
    %1890 = vmatpush2.bf16.msra.mxu0 %v1431
    %1891 = vmatprep.subr.bf16.mxu0 %v1428
    %1892 = vmatpush2.bf16.msra.mxu0 %v1427
    %1893 = vmatprep.subr.bf16.mxu0 %v1424
    %1894 = vmatpush2.bf16.msra.mxu0 %v1423
    %1895 = vmatprep.subr.bf16.mxu0 %v1420
    %1896 = vmatpush2.bf16.msra.mxu0 %v1419
    %1897 = vmatprep.subr.bf16.mxu0 %v1416
    %1898 = vmatpush2.bf16.msra.mxu0 %v1415
    %1899 = vmatprep.subr.bf16.mxu0 %v1412
    %1900 = vmatpush2.bf16.msra.mxu0 %v1411
    %1901 = vmatprep.subr.bf16.mxu0 %v1408
    %1902 = vmatpush2.bf16.msra.mxu0 %v1407
    %1903 = vmatprep.subr.bf16.mxu0 %v1404
    %1904 = vmatpush2.bf16.msra.mxu0 %v1403
    %1905 = vmatprep.mubr.bf16.mxu0 %v129
    %1906 = vmatmul.mubr.bf16.gmra.mxu0 %v128
    %v1907 = vpop.f32.mrf.mxu0
    %v1908 = vadd.f32 %v1867, %v1907
    %v1909 = vpop.f32.mrf.mxu0
    %v1910 = vadd.f32 %v1869, %v1909
    %v1911 = vpop.f32.mrf.mxu0
    %v1912 = vpop.f32.mrf.mxu0
    %1913 = vdwg.mxu0
    %1914 = vmatprep.subr.bf16.mxu0 %v1464
    %1915 = vmatpush1.bf16.msra.mxu0 %v1463
    %1916 = vmatprep.subr.bf16.mxu0 %v1460
    %1917 = vmatpush1.bf16.msra.mxu0 %v1459
    %1918 = vmatprep.subr.bf16.mxu0 %v1456
    %1919 = vmatpush1.bf16.msra.mxu0 %v1455
    %1920 = vmatprep.subr.bf16.mxu0 %v1452
    %1921 = vmatpush1.bf16.msra.mxu0 %v1451
    %1922 = vmatprep.subr.bf16.mxu0 %v1448
    %1923 = vmatpush1.bf16.msra.mxu0 %v1447
    %1924 = vmatprep.subr.bf16.mxu0 %v1444
    %1925 = vmatpush1.bf16.msra.mxu0 %v1443
    %1926 = vmatprep.subr.bf16.mxu0 %v1440
    %1927 = vmatpush1.bf16.msra.mxu0 %v1439
    %1928 = vmatprep.subr.bf16.mxu0 %v1436
    %1929 = vmatpush1.bf16.msra.mxu0 %v1435
    %1930 = vmatprep.subr.bf16.mxu0 %v1496
    %1931 = vmatpush2.bf16.msra.mxu0 %v1495
    %1932 = vmatprep.subr.bf16.mxu0 %v1492
    %1933 = vmatpush2.bf16.msra.mxu0 %v1491
    %1934 = vmatprep.subr.bf16.mxu0 %v1488
    %1935 = vmatpush2.bf16.msra.mxu0 %v1487
    %1936 = vmatprep.subr.bf16.mxu0 %v1484
    %1937 = vmatpush2.bf16.msra.mxu0 %v1483
    %1938 = vmatprep.subr.bf16.mxu0 %v1480
    %1939 = vmatpush2.bf16.msra.mxu0 %v1479
    %1940 = vmatprep.subr.bf16.mxu0 %v1476
    %1941 = vmatpush2.bf16.msra.mxu0 %v1475
    %1942 = vmatprep.subr.bf16.mxu0 %v1472
    %1943 = vmatpush2.bf16.msra.mxu0 %v1471
    %1944 = vmatprep.subr.bf16.mxu0 %v1468
    %1945 = vmatpush2.bf16.msra.mxu0 %v1467
    %1946 = vmatprep.mubr.bf16.mxu0 %v131
    %1947 = vmatmul.mubr.bf16.gmra.mxu0 %v130
    %v1948 = vpop.f32.mrf.mxu0
    %v1949 = vadd.f32 %v1908, %v1948
    %v1950 = vpop.f32.mrf.mxu0
    %v1951 = vadd.f32 %v1910, %v1950
    %v1952 = vpop.f32.mrf.mxu0
    %v1953 = vpop.f32.mrf.mxu0
    %1954 = vdwg.mxu0
    %1955 = vmatprep.subr.bf16.mxu0 0
    %1956 = vmatpush1.bf16.msra.mxu0 0
    %1957 = vmatprep.subr.bf16.mxu0 0
    %1958 = vmatpush1.bf16.msra.mxu0 0
    %1959 = vmatprep.subr.bf16.mxu0 0
    %1960 = vmatpush1.bf16.msra.mxu0 0
    %1961 = vmatprep.subr.bf16.mxu0 0
    %1962 = vmatpush1.bf16.msra.mxu0 0
    %1963 = vmatprep.subr.bf16.mxu0 %v1512
    %1964 = vmatpush1.bf16.msra.mxu0 %v1511
    %1965 = vmatprep.subr.bf16.mxu0 %v1508
    %1966 = vmatpush1.bf16.msra.mxu0 %v1507
    %1967 = vmatprep.subr.bf16.mxu0 %v1504
    %1968 = vmatpush1.bf16.msra.mxu0 %v1503
    %1969 = vmatprep.subr.bf16.mxu0 %v1500
    %1970 = vmatpush1.bf16.msra.mxu0 %v1499
    %1971 = vmatprep.subr.bf16.mxu0 0
    %1972 = vmatpush2.bf16.msra.mxu0 0
    %1973 = vmatprep.subr.bf16.mxu0 0
    %1974 = vmatpush2.bf16.msra.mxu0 0
    %1975 = vmatprep.subr.bf16.mxu0 0
    %1976 = vmatpush2.bf16.msra.mxu0 0
    %1977 = vmatprep.subr.bf16.mxu0 0
    %1978 = vmatpush2.bf16.msra.mxu0 0
    %1979 = vmatprep.subr.bf16.mxu0 0
    %1980 = vmatpush2.bf16.msra.mxu0 0
    %1981 = vmatprep.subr.bf16.mxu0 0
    %1982 = vmatpush2.bf16.msra.mxu0 0
    %1983 = vmatprep.subr.bf16.mxu0 0
    %1984 = vmatpush2.bf16.msra.mxu0 0
    %1985 = vmatprep.subr.bf16.mxu0 0
    %1986 = vmatpush2.bf16.msra.mxu0 0
    %1987 = vmatprep.mubr.bf16.mxu0 0
    %1988 = vmatmul.mubr.bf16.gmra.mxu0 %v1789
    %v1989 = vpop.f32.mrf.mxu0
    %v1990 = vadd.f32 %v1949, %v1989
    %v1991 = vpop.f32.mrf.mxu0
    %v1992 = vadd.f32 %v1951, %v1991
    %v1993 = vpop.f32.mrf.mxu0
    %v1994 = vpop.f32.mrf.mxu0
    %1995 = vdwg.mxu0
    %1996 = vmatprep.subr.bf16.mxu0 %v1274
    %1997 = vmatpush1.bf16.msra.mxu0 %v1273
    %1998 = vmatprep.subr.bf16.mxu0 %v1270
    %1999 = vmatpush1.bf16.msra.mxu0 %v1269
    %2000 = vmatprep.subr.bf16.mxu0 %v1266
    %2001 = vmatpush1.bf16.msra.mxu0 %v1265
    %2002 = vmatprep.subr.bf16.mxu0 %v1262
    %2003 = vmatpush1.bf16.msra.mxu0 %v1261
    %2004 = vmatprep.subr.bf16.mxu0 %v1258
    %2005 = vmatpush1.bf16.msra.mxu0 %v1257
    %2006 = vmatprep.subr.bf16.mxu0 %v1254
    %2007 = vmatpush1.bf16.msra.mxu0 %v1253
    %2008 = vmatprep.subr.bf16.mxu0 %v1250
    %2009 = vmatpush1.bf16.msra.mxu0 %v1249
    %2010 = vmatprep.subr.bf16.mxu0 %v1246
    %2011 = vmatpush1.bf16.msra.mxu0 %v1245
    %2012 = vmatprep.subr.bf16.mxu0 %v1306
    %2013 = vmatpush2.bf16.msra.mxu0 %v1305
    %2014 = vmatprep.subr.bf16.mxu0 %v1302
    %2015 = vmatpush2.bf16.msra.mxu0 %v1301
    %2016 = vmatprep.subr.bf16.mxu0 %v1298
    %2017 = vmatpush2.bf16.msra.mxu0 %v1297
    %2018 = vmatprep.subr.bf16.mxu0 %v1294
    %2019 = vmatpush2.bf16.msra.mxu0 %v1293
    %2020 = vmatprep.subr.bf16.mxu0 %v1290
    %2021 = vmatpush2.bf16.msra.mxu0 %v1289
    %2022 = vmatprep.subr.bf16.mxu0 %v1286
    %2023 = vmatpush2.bf16.msra.mxu0 %v1285
    %2024 = vmatprep.subr.bf16.mxu0 %v1282
    %2025 = vmatpush2.bf16.msra.mxu0 %v1281
    %2026 = vmatprep.subr.bf16.mxu0 %v1278
    %2027 = vmatpush2.bf16.msra.mxu0 %v1277
    %2028 = vmatprep.mubr.bf16.mxu0 %v125
    %2029 = vmatmul.mubr.bf16.gmra.mxu0 %v124
    %v2030 = vpop.f32.mrf.mxu0
    %v2031 = vadd.f32 %v418, %v2030
    %v2032 = vpop.f32.mrf.mxu0
    %v2033 = vadd.f32 %v422, %v2032
    %v2034 = vpop.f32.mrf.mxu0
    %v2035 = vpop.f32.mrf.mxu0
    %2036 = vdwg.mxu0
    %2037 = vmatprep.subr.bf16.mxu0 %v1338
    %2038 = vmatpush1.bf16.msra.mxu0 %v1337
    %2039 = vmatprep.subr.bf16.mxu0 %v1334
    %2040 = vmatpush1.bf16.msra.mxu0 %v1333
    %2041 = vmatprep.subr.bf16.mxu0 %v1330
    %2042 = vmatpush1.bf16.msra.mxu0 %v1329
    %2043 = vmatprep.subr.bf16.mxu0 %v1326
    %2044 = vmatpush1.bf16.msra.mxu0 %v1325
    %2045 = vmatprep.subr.bf16.mxu0 %v1322
    %2046 = vmatpush1.bf16.msra.mxu0 %v1321
    %2047 = vmatprep.subr.bf16.mxu0 %v1318
    %2048 = vmatpush1.bf16.msra.mxu0 %v1317
    %2049 = vmatprep.subr.bf16.mxu0 %v1314
    %2050 = vmatpush1.bf16.msra.mxu0 %v1313
    %2051 = vmatprep.subr.bf16.mxu0 %v1310
    %2052 = vmatpush1.bf16.msra.mxu0 %v1309
    %2053 = vmatprep.subr.bf16.mxu0 %v1370
    %2054 = vmatpush2.bf16.msra.mxu0 %v1369
    %2055 = vmatprep.subr.bf16.mxu0 %v1366
    %2056 = vmatpush2.bf16.msra.mxu0 %v1365
    %2057 = vmatprep.subr.bf16.mxu0 %v1362
    %2058 = vmatpush2.bf16.msra.mxu0 %v1361
    %2059 = vmatprep.subr.bf16.mxu0 %v1358
    %2060 = vmatpush2.bf16.msra.mxu0 %v1357
    %2061 = vmatprep.subr.bf16.mxu0 %v1354
    %2062 = vmatpush2.bf16.msra.mxu0 %v1353
    %2063 = vmatprep.subr.bf16.mxu0 %v1350
    %2064 = vmatpush2.bf16.msra.mxu0 %v1349
    %2065 = vmatprep.subr.bf16.mxu0 %v1346
    %2066 = vmatpush2.bf16.msra.mxu0 %v1345
    %2067 = vmatprep.subr.bf16.mxu0 %v1342
    %2068 = vmatpush2.bf16.msra.mxu0 %v1341
    %2069 = vmatprep.mubr.bf16.mxu0 %v127
    %2070 = vmatmul.mubr.bf16.gmra.mxu0 %v126
    %v2071 = vpop.f32.mrf.mxu0
    %v2072 = vadd.f32 %v2031, %v2071
    %v2073 = vpop.f32.mrf.mxu0
    %v2074 = vadd.f32 %v2033, %v2073
    %v2075 = vpop.f32.mrf.mxu0
    %v2076 = vpop.f32.mrf.mxu0
    %2077 = vdwg.mxu0
    %2078 = vmatprep.subr.bf16.mxu0 %v1402
    %2079 = vmatpush1.bf16.msra.mxu0 %v1401
    %2080 = vmatprep.subr.bf16.mxu0 %v1398
    %2081 = vmatpush1.bf16.msra.mxu0 %v1397
    %2082 = vmatprep.subr.bf16.mxu0 %v1394
    %2083 = vmatpush1.bf16.msra.mxu0 %v1393
    %2084 = vmatprep.subr.bf16.mxu0 %v1390
    %2085 = vmatpush1.bf16.msra.mxu0 %v1389
    %2086 = vmatprep.subr.bf16.mxu0 %v1386
    %2087 = vmatpush1.bf16.msra.mxu0 %v1385
    %2088 = vmatprep.subr.bf16.mxu0 %v1382
    %2089 = vmatpush1.bf16.msra.mxu0 %v1381
    %2090 = vmatprep.subr.bf16.mxu0 %v1378
    %2091 = vmatpush1.bf16.msra.mxu0 %v1377
    %2092 = vmatprep.subr.bf16.mxu0 %v1374
    %2093 = vmatpush1.bf16.msra.mxu0 %v1373
    %2094 = vmatprep.subr.bf16.mxu0 %v1434
    %2095 = vmatpush2.bf16.msra.mxu0 %v1433
    %2096 = vmatprep.subr.bf16.mxu0 %v1430
    %2097 = vmatpush2.bf16.msra.mxu0 %v1429
    %2098 = vmatprep.subr.bf16.mxu0 %v1426
    %2099 = vmatpush2.bf16.msra.mxu0 %v1425
    %2100 = vmatprep.subr.bf16.mxu0 %v1422
    %2101 = vmatpush2.bf16.msra.mxu0 %v1421
    %2102 = vmatprep.subr.bf16.mxu0 %v1418
    %2103 = vmatpush2.bf16.msra.mxu0 %v1417
    %2104 = vmatprep.subr.bf16.mxu0 %v1414
    %2105 = vmatpush2.bf16.msra.mxu0 %v1413
    %2106 = vmatprep.subr.bf16.mxu0 %v1410
    %2107 = vmatpush2.bf16.msra.mxu0 %v1409
    %2108 = vmatprep.subr.bf16.mxu0 %v1406
    %2109 = vmatpush2.bf16.msra.mxu0 %v1405
    %2110 = vmatprep.mubr.bf16.mxu0 %v129
    %2111 = vmatmul.mubr.bf16.gmra.mxu0 %v128
    %v2112 = vpop.f32.mrf.mxu0
    %v2113 = vadd.f32 %v2072, %v2112
    %v2114 = vpop.f32.mrf.mxu0
    %v2115 = vadd.f32 %v2074, %v2114
    %v2116 = vpop.f32.mrf.mxu0
    %v2117 = vpop.f32.mrf.mxu0
    %2118 = vdwg.mxu0
    %2119 = vmatprep.subr.bf16.mxu0 %v1466
    %2120 = vmatpush1.bf16.msra.mxu0 %v1465
    %2121 = vmatprep.subr.bf16.mxu0 %v1462
    %2122 = vmatpush1.bf16.msra.mxu0 %v1461
    %2123 = vmatprep.subr.bf16.mxu0 %v1458
    %2124 = vmatpush1.bf16.msra.mxu0 %v1457
    %2125 = vmatprep.subr.bf16.mxu0 %v1454
    %2126 = vmatpush1.bf16.msra.mxu0 %v1453
    %2127 = vmatprep.subr.bf16.mxu0 %v1450
    %2128 = vmatpush1.bf16.msra.mxu0 %v1449
    %2129 = vmatprep.subr.bf16.mxu0 %v1446
    %2130 = vmatpush1.bf16.msra.mxu0 %v1445
    %2131 = vmatprep.subr.bf16.mxu0 %v1442
    %2132 = vmatpush1.bf16.msra.mxu0 %v1441
    %2133 = vmatprep.subr.bf16.mxu0 %v1438
    %2134 = vmatpush1.bf16.msra.mxu0 %v1437
    %2135 = vmatprep.subr.bf16.mxu0 %v1498
    %2136 = vmatpush2.bf16.msra.mxu0 %v1497
    %2137 = vmatprep.subr.bf16.mxu0 %v1494
    %2138 = vmatpush2.bf16.msra.mxu0 %v1493
    %2139 = vmatprep.subr.bf16.mxu0 %v1490
    %2140 = vmatpush2.bf16.msra.mxu0 %v1489
    %2141 = vmatprep.subr.bf16.mxu0 %v1486
    %2142 = vmatpush2.bf16.msra.mxu0 %v1485
    %2143 = vmatprep.subr.bf16.mxu0 %v1482
    %2144 = vmatpush2.bf16.msra.mxu0 %v1481
    %2145 = vmatprep.subr.bf16.mxu0 %v1478
    %2146 = vmatpush2.bf16.msra.mxu0 %v1477
    %2147 = vmatprep.subr.bf16.mxu0 %v1474
    %2148 = vmatpush2.bf16.msra.mxu0 %v1473
    %2149 = vmatprep.subr.bf16.mxu0 %v1470
    %2150 = vmatpush2.bf16.msra.mxu0 %v1469
    %2151 = vmatprep.mubr.bf16.mxu0 %v131
    %2152 = vmatmul.mubr.bf16.gmra.mxu0 %v130
    %v2153 = vpop.f32.mrf.mxu0
    %v2154 = vadd.f32 %v2113, %v2153
    %v2155 = vpop.f32.mrf.mxu0
    %v2156 = vadd.f32 %v2115, %v2155
    %v2157 = vpop.f32.mrf.mxu0
    %v2158 = vpop.f32.mrf.mxu0
    %2159 = vdwg.mxu0
    %2160 = vmatprep.subr.bf16.mxu0 0
    %2161 = vmatpush1.bf16.msra.mxu0 0
    %2162 = vmatprep.subr.bf16.mxu0 0
    %2163 = vmatpush1.bf16.msra.mxu0 0
    %2164 = vmatprep.subr.bf16.mxu0 0
    %2165 = vmatpush1.bf16.msra.mxu0 0
    %2166 = vmatprep.subr.bf16.mxu0 0
    %2167 = vmatpush1.bf16.msra.mxu0 0
    %2168 = vmatprep.subr.bf16.mxu0 %v1514
    %2169 = vmatpush1.bf16.msra.mxu0 %v1513
    %2170 = vmatprep.subr.bf16.mxu0 %v1510
    %2171 = vmatpush1.bf16.msra.mxu0 %v1509
    %2172 = vmatprep.subr.bf16.mxu0 %v1506
    %2173 = vmatpush1.bf16.msra.mxu0 %v1505
    %2174 = vmatprep.subr.bf16.mxu0 %v1502
    %2175 = vmatpush1.bf16.msra.mxu0 %v1501
    %2176 = vmatprep.subr.bf16.mxu0 0
    %2177 = vmatpush2.bf16.msra.mxu0 0
    %2178 = vmatprep.subr.bf16.mxu0 0
    %2179 = vmatpush2.bf16.msra.mxu0 0
    %2180 = vmatprep.subr.bf16.mxu0 0
    %2181 = vmatpush2.bf16.msra.mxu0 0
    %2182 = vmatprep.subr.bf16.mxu0 0
    %2183 = vmatpush2.bf16.msra.mxu0 0
    %2184 = vmatprep.subr.bf16.mxu0 0
    %2185 = vmatpush2.bf16.msra.mxu0 0
    %2186 = vmatprep.subr.bf16.mxu0 0
    %2187 = vmatpush2.bf16.msra.mxu0 0
    %2188 = vmatprep.subr.bf16.mxu0 0
    %2189 = vmatpush2.bf16.msra.mxu0 0
    %2190 = vmatprep.subr.bf16.mxu0 0
    %2191 = vmatpush2.bf16.msra.mxu0 0
    %2192 = vmatprep.mubr.bf16.mxu0 0
    %2193 = vmatmul.mubr.bf16.gmra.mxu0 %v1789
    %v2194 = vpop.f32.mrf.mxu0
    %v2195 = vadd.f32 %v2154, %v2194
    %v2196 = vpop.f32.mrf.mxu0
    %v2197 = vadd.f32 %v2156, %v2196
    %v2198 = vpop.f32.mrf.mxu0
    %v2199 = vpop.f32.mrf.mxu0
    %2200 = vdwg.mxu0
    %v2201 = vmax.f32 %v1990, 0.0
    %v2202 = vmax.f32 %v1992, 0.0
    %v2203 = vmax.f32 %v2195, 0.0
    %v2204 = vmax.f32 %v2197, 0.0
    %v2205 = vpack.c.bf16 %v2201, %v2201
    %v2206 = vpack.c.bf16 %v2202, %v2202
    %v2207 = vpack.c.bf16 %v2203, %v2203
    %v2208 = vpack.c.bf16 %v2204, %v2204
    %v2209 = vld [vmem:[#allocation8] sm:$0xff]
    %v2210 = vld [vmem:[#allocation8 + $0x8] sm:$0xff]
    %v2211 = vld [vmem:[#allocation8 + $0x10] sm:$0xff]
    %v2212 = vld [vmem:[#allocation8 + $0x18] sm:$0xff]
    %v2213 = vld [vmem:[#allocation8 + $0x20] sm:$0xff]
    %v2214 = vld [vmem:[#allocation8 + $0x28] sm:$0xff]
    %v2215 = vld [vmem:[#allocation8 + $0x30] sm:$0xff]
    %v2216 = vld [vmem:[#allocation8 + $0x38] sm:$0xff]
    %v2217 = vld [vmem:[#allocation8 + $0x40] sm:$0xff]
    %v2218 = vld [vmem:[#allocation8 + $0x48] sm:$0xff]
    %v2219 = vld [vmem:[#allocation8 + $0x50] sm:$0xff]
    %v2220 = vld [vmem:[#allocation8 + $0x58] sm:$0xff]
    %v2221 = vld [vmem:[#allocation8 + $0x60] sm:$0xff]
    %v2222 = vld [vmem:[#allocation8 + $0x68] sm:$0xff]
    %v2223 = vld [vmem:[#allocation8 + $0x70] sm:$0xff]
    %v2224 = vld [vmem:[#allocation8 + $0x78] sm:$0xff]
    %v2225 = vld [vmem:[#allocation8 + $0x80] sm:$0xff]
    %v2226 = vld [vmem:[#allocation8 + $0x88] sm:$0xff]
    %v2227 = vld [vmem:[#allocation8 + $0x90] sm:$0xff]
    %v2228 = vld [vmem:[#allocation8 + $0x98] sm:$0xff]
    %v2229 = vld [vmem:[#allocation8 + $0xa0] sm:$0xff]
    %v2230 = vld [vmem:[#allocation8 + $0xa8] sm:$0xff]
    %v2231 = vld [vmem:[#allocation8 + $0xb0] sm:$0xff]
    %v2232 = vld [vmem:[#allocation8 + $0xb8] sm:$0xff]
    %v2233 = vld [vmem:[#allocation8 + $0xc0] sm:$0xff]
    %v2234 = vld [vmem:[#allocation8 + $0xc8] sm:$0xff]
    %v2235 = vld [vmem:[#allocation8 + $0xd0] sm:$0xff]
    %v2236 = vld [vmem:[#allocation8 + $0xd8] sm:$0xff]
    %v2237 = vld [vmem:[#allocation8 + $0xe0] sm:$0xff]
    %v2238 = vld [vmem:[#allocation8 + $0xe8] sm:$0xff]
    %v2239 = vld [vmem:[#allocation8 + $0xf0] sm:$0xff]
    %v2240 = vld [vmem:[#allocation8 + $0xf8] sm:$0xff]
    %v2241 = vld [vmem:[#allocation8 + $0x100] sm:$0xff]
    %v2242 = vld [vmem:[#allocation8 + $0x108] sm:$0xff]
    %v2243 = vld [vmem:[#allocation8 + $0x110] sm:$0xff]
    %v2244 = vld [vmem:[#allocation8 + $0x118] sm:$0xff]
    %v2245 = vld [vmem:[#allocation8 + $0x120] sm:$0xff]
    %v2246 = vld [vmem:[#allocation8 + $0x128] sm:$0xff]
    %v2247 = vld [vmem:[#allocation8 + $0x130] sm:$0xff]
    %v2248 = vld [vmem:[#allocation8 + $0x138] sm:$0xff]
    %v2249 = vld [vmem:[#allocation8 + $0x140] sm:$0xff]
    %v2250 = vld [vmem:[#allocation8 + $0x148] sm:$0xff]
    %v2251 = vld [vmem:[#allocation8 + $0x150] sm:$0xff]
    %v2252 = vld [vmem:[#allocation8 + $0x158] sm:$0xff]
    %v2253 = vld [vmem:[#allocation8 + $0x160] sm:$0xff]
    %v2254 = vld [vmem:[#allocation8 + $0x168] sm:$0xff]
    %v2255 = vld [vmem:[#allocation8 + $0x170] sm:$0xff]
    %v2256 = vld [vmem:[#allocation8 + $0x178] sm:$0xff]
    %v2257 = vld [vmem:[#allocation8 + $0x180] sm:$0xff]
    %v2258 = vld [vmem:[#allocation8 + $0x188] sm:$0xff]
    %v2259 = vld [vmem:[#allocation8 + $0x190] sm:$0xff]
    %v2260 = vld [vmem:[#allocation8 + $0x198] sm:$0xff]
    %v2261 = vld [vmem:[#allocation8 + $0x1a0] sm:$0xff]
    %v2262 = vld [vmem:[#allocation8 + $0x1a8] sm:$0xff]
    %v2263 = vld [vmem:[#allocation8 + $0x1b0] sm:$0xff]
    %v2264 = vld [vmem:[#allocation8 + $0x1b8] sm:$0xff]
    %v2265 = vld [vmem:[#allocation8 + $0x1c0] sm:$0xff]
    %v2266 = vld [vmem:[#allocation8 + $0x1c8] sm:$0xff]
    %v2267 = vld [vmem:[#allocation8 + $0x1d0] sm:$0xff]
    %v2268 = vld [vmem:[#allocation8 + $0x1d8] sm:$0xff]
    %v2269 = vld [vmem:[#allocation8 + $0x1e0] sm:$0xff]
    %v2270 = vld [vmem:[#allocation8 + $0x1e8] sm:$0xff]
    %v2271 = vld [vmem:[#allocation8 + $0x1f0] sm:$0xff]
    %v2272 = vld [vmem:[#allocation8 + $0x1f8] sm:$0xff]
    %v2273 = vld [vmem:[#allocation10] sm:$0x3]
    %v2275 = vlaneseq
    %v2276 = vshrl.u32 %v2275, 7
    %v2277 = vsub.s32 0, %v2276
    %v2278 = vrot.slane %v2273, %v2277
    %v2279 = vlaneseq
    %v2280 = vshrl.u32 %v2279, 7
    %v2281 = vsub.s32 1, %v2280
    %v2282 = vrot.slane %v2273, %v2281
    %v2349 = vunpack.c.l.b16 %v2209
    %v2350 = vunpack.c.h.b16 %v2209
    %v2351 = vunpack.c.l.b16 %v2210
    %v2352 = vunpack.c.h.b16 %v2210
    %v2353 = vunpack.c.l.b16 %v2211
    %v2354 = vunpack.c.h.b16 %v2211
    %v2355 = vunpack.c.l.b16 %v2212
    %v2356 = vunpack.c.h.b16 %v2212
    %v2357 = vunpack.c.l.b16 %v2213
    %v2358 = vunpack.c.h.b16 %v2213
    %v2359 = vunpack.c.l.b16 %v2214
    %v2360 = vunpack.c.h.b16 %v2214
    %v2361 = vunpack.c.l.b16 %v2215
    %v2362 = vunpack.c.h.b16 %v2215
    %v2363 = vunpack.c.l.b16 %v2216
    %v2364 = vunpack.c.h.b16 %v2216
    %v2365 = vunpack.c.l.b16 %v2217
    %v2366 = vunpack.c.h.b16 %v2217
    %v2367 = vunpack.c.l.b16 %v2218
    %v2368 = vunpack.c.h.b16 %v2218
    %v2369 = vunpack.c.l.b16 %v2219
    %v2370 = vunpack.c.h.b16 %v2219
    %v2371 = vunpack.c.l.b16 %v2220
    %v2372 = vunpack.c.h.b16 %v2220
    %v2373 = vunpack.c.l.b16 %v2221
    %v2374 = vunpack.c.h.b16 %v2221
    %v2375 = vunpack.c.l.b16 %v2222
    %v2376 = vunpack.c.h.b16 %v2222
    %v2377 = vunpack.c.l.b16 %v2223
    %v2378 = vunpack.c.h.b16 %v2223
    %v2379 = vunpack.c.l.b16 %v2224
    %v2380 = vunpack.c.h.b16 %v2224
    %v2381 = vunpack.c.l.b16 %v2225
    %v2382 = vunpack.c.h.b16 %v2225
    %v2383 = vunpack.c.l.b16 %v2226
    %v2384 = vunpack.c.h.b16 %v2226
    %v2385 = vunpack.c.l.b16 %v2227
    %v2386 = vunpack.c.h.b16 %v2227
    %v2387 = vunpack.c.l.b16 %v2228
    %v2388 = vunpack.c.h.b16 %v2228
    %v2389 = vunpack.c.l.b16 %v2229
    %v2390 = vunpack.c.h.b16 %v2229
    %v2391 = vunpack.c.l.b16 %v2230
    %v2392 = vunpack.c.h.b16 %v2230
    %v2393 = vunpack.c.l.b16 %v2231
    %v2394 = vunpack.c.h.b16 %v2231
    %v2395 = vunpack.c.l.b16 %v2232
    %v2396 = vunpack.c.h.b16 %v2232
    %v2397 = vunpack.c.l.b16 %v2233
    %v2398 = vunpack.c.h.b16 %v2233
    %v2399 = vunpack.c.l.b16 %v2234
    %v2400 = vunpack.c.h.b16 %v2234
    %v2401 = vunpack.c.l.b16 %v2235
    %v2402 = vunpack.c.h.b16 %v2235
    %v2403 = vunpack.c.l.b16 %v2236
    %v2404 = vunpack.c.h.b16 %v2236
    %v2405 = vunpack.c.l.b16 %v2237
    %v2406 = vunpack.c.h.b16 %v2237
    %v2407 = vunpack.c.l.b16 %v2238
    %v2408 = vunpack.c.h.b16 %v2238
    %v2409 = vunpack.c.l.b16 %v2239
    %v2410 = vunpack.c.h.b16 %v2239
    %v2411 = vunpack.c.l.b16 %v2240
    %v2412 = vunpack.c.h.b16 %v2240
    %v2413 = vunpack.c.l.b16 %v2241
    %v2414 = vunpack.c.h.b16 %v2241
    %v2415 = vunpack.c.l.b16 %v2242
    %v2416 = vunpack.c.h.b16 %v2242
    %v2417 = vunpack.c.l.b16 %v2243
    %v2418 = vunpack.c.h.b16 %v2243
    %v2419 = vunpack.c.l.b16 %v2244
    %v2420 = vunpack.c.h.b16 %v2244
    %v2421 = vunpack.c.l.b16 %v2245
    %v2422 = vunpack.c.h.b16 %v2245
    %v2423 = vunpack.c.l.b16 %v2246
    %v2424 = vunpack.c.h.b16 %v2246
    %v2425 = vunpack.c.l.b16 %v2247
    %v2426 = vunpack.c.h.b16 %v2247
    %v2427 = vunpack.c.l.b16 %v2248
    %v2428 = vunpack.c.h.b16 %v2248
    %v2429 = vunpack.c.l.b16 %v2249
    %v2430 = vunpack.c.h.b16 %v2249
    %v2431 = vunpack.c.l.b16 %v2250
    %v2432 = vunpack.c.h.b16 %v2250
    %v2433 = vunpack.c.l.b16 %v2251
    %v2434 = vunpack.c.h.b16 %v2251
    %v2435 = vunpack.c.l.b16 %v2252
    %v2436 = vunpack.c.h.b16 %v2252
    %v2437 = vunpack.c.l.b16 %v2253
    %v2438 = vunpack.c.h.b16 %v2253
    %v2439 = vunpack.c.l.b16 %v2254
    %v2440 = vunpack.c.h.b16 %v2254
    %v2441 = vunpack.c.l.b16 %v2255
    %v2442 = vunpack.c.h.b16 %v2255
    %v2443 = vunpack.c.l.b16 %v2256
    %v2444 = vunpack.c.h.b16 %v2256
    %v2445 = vunpack.c.l.b16 %v2257
    %v2446 = vunpack.c.h.b16 %v2257
    %v2447 = vunpack.c.l.b16 %v2258
    %v2448 = vunpack.c.h.b16 %v2258
    %v2449 = vunpack.c.l.b16 %v2259
    %v2450 = vunpack.c.h.b16 %v2259
    %v2451 = vunpack.c.l.b16 %v2260
    %v2452 = vunpack.c.h.b16 %v2260
    %v2453 = vunpack.c.l.b16 %v2261
    %v2454 = vunpack.c.h.b16 %v2261
    %v2455 = vunpack.c.l.b16 %v2262
    %v2456 = vunpack.c.h.b16 %v2262
    %v2457 = vunpack.c.l.b16 %v2263
    %v2458 = vunpack.c.h.b16 %v2263
    %v2459 = vunpack.c.l.b16 %v2264
    %v2460 = vunpack.c.h.b16 %v2264
    %v2461 = vunpack.c.l.b16 %v2265
    %v2462 = vunpack.c.h.b16 %v2265
    %v2463 = vunpack.c.l.b16 %v2266
    %v2464 = vunpack.c.h.b16 %v2266
    %v2465 = vunpack.c.l.b16 %v2267
    %v2466 = vunpack.c.h.b16 %v2267
    %v2467 = vunpack.c.l.b16 %v2268
    %v2468 = vunpack.c.h.b16 %v2268
    %v2469 = vunpack.c.l.b16 %v2269
    %v2470 = vunpack.c.h.b16 %v2269
    %v2471 = vunpack.c.l.b16 %v2270
    %v2472 = vunpack.c.h.b16 %v2270
    %v2473 = vunpack.c.l.b16 %v2271
    %v2474 = vunpack.c.h.b16 %v2271
    %v2475 = vunpack.c.l.b16 %v2272
    %v2476 = vunpack.c.h.b16 %v2272
    %v2477 = vpack.c.b16 %v2351, %v2349
    %v2478 = vpack.c.b16 %v2352, %v2350
    %v2479 = vpack.c.b16 %v2355, %v2353
    %v2480 = vpack.c.b16 %v2356, %v2354
    %v2481 = vpack.c.b16 %v2359, %v2357
    %v2482 = vpack.c.b16 %v2360, %v2358
    %v2483 = vpack.c.b16 %v2363, %v2361
    %v2484 = vpack.c.b16 %v2364, %v2362
    %v2485 = vpack.c.b16 %v2367, %v2365
    %v2486 = vpack.c.b16 %v2368, %v2366
    %v2487 = vpack.c.b16 %v2371, %v2369
    %v2488 = vpack.c.b16 %v2372, %v2370
    %v2489 = vpack.c.b16 %v2375, %v2373
    %v2490 = vpack.c.b16 %v2376, %v2374
    %v2491 = vpack.c.b16 %v2379, %v2377
    %v2492 = vpack.c.b16 %v2380, %v2378
    %v2493 = vpack.c.b16 %v2383, %v2381
    %v2494 = vpack.c.b16 %v2384, %v2382
    %v2495 = vpack.c.b16 %v2387, %v2385
    %v2496 = vpack.c.b16 %v2388, %v2386
    %v2497 = vpack.c.b16 %v2391, %v2389
    %v2498 = vpack.c.b16 %v2392, %v2390
    %v2499 = vpack.c.b16 %v2395, %v2393
    %v2500 = vpack.c.b16 %v2396, %v2394
    %v2501 = vpack.c.b16 %v2399, %v2397
    %v2502 = vpack.c.b16 %v2400, %v2398
    %v2503 = vpack.c.b16 %v2403, %v2401
    %v2504 = vpack.c.b16 %v2404, %v2402
    %v2505 = vpack.c.b16 %v2407, %v2405
    %v2506 = vpack.c.b16 %v2408, %v2406
    %v2507 = vpack.c.b16 %v2411, %v2409
    %v2508 = vpack.c.b16 %v2412, %v2410
    %v2509 = vpack.c.b16 %v2415, %v2413
    %v2510 = vpack.c.b16 %v2416, %v2414
    %v2511 = vpack.c.b16 %v2419, %v2417
    %v2512 = vpack.c.b16 %v2420, %v2418
    %v2513 = vpack.c.b16 %v2423, %v2421
    %v2514 = vpack.c.b16 %v2424, %v2422
    %v2515 = vpack.c.b16 %v2427, %v2425
    %v2516 = vpack.c.b16 %v2428, %v2426
    %v2517 = vpack.c.b16 %v2431, %v2429
    %v2518 = vpack.c.b16 %v2432, %v2430
    %v2519 = vpack.c.b16 %v2435, %v2433
    %v2520 = vpack.c.b16 %v2436, %v2434
    %v2521 = vpack.c.b16 %v2439, %v2437
    %v2522 = vpack.c.b16 %v2440, %v2438
    %v2523 = vpack.c.b16 %v2443, %v2441
    %v2524 = vpack.c.b16 %v2444, %v2442
    %v2525 = vpack.c.b16 %v2447, %v2445
    %v2526 = vpack.c.b16 %v2448, %v2446
    %v2527 = vpack.c.b16 %v2451, %v2449
    %v2528 = vpack.c.b16 %v2452, %v2450
    %v2529 = vpack.c.b16 %v2455, %v2453
    %v2530 = vpack.c.b16 %v2456, %v2454
    %v2531 = vpack.c.b16 %v2459, %v2457
    %v2532 = vpack.c.b16 %v2460, %v2458
    %v2533 = vpack.c.b16 %v2463, %v2461
    %v2534 = vpack.c.b16 %v2464, %v2462
    %v2535 = vpack.c.b16 %v2467, %v2465
    %v2536 = vpack.c.b16 %v2468, %v2466
    %v2537 = vpack.c.b16 %v2471, %v2469
    %v2538 = vpack.c.b16 %v2472, %v2470
    %v2539 = vpack.c.b16 %v2475, %v2473
    %v2540 = vpack.c.b16 %v2476, %v2474
    %2605 = vmatprep.subr.bf16.mxu0 %v2492
    %2606 = vmatpush1.bf16.msra.mxu0 %v2491
    %2607 = vmatprep.subr.bf16.mxu0 %v2490
    %2608 = vmatpush1.bf16.msra.mxu0 %v2489
    %2609 = vmatprep.subr.bf16.mxu0 %v2488
    %2610 = vmatpush1.bf16.msra.mxu0 %v2487
    %2611 = vmatprep.subr.bf16.mxu0 %v2486
    %2612 = vmatpush1.bf16.msra.mxu0 %v2485
    %2613 = vmatprep.subr.bf16.mxu0 %v2484
    %2614 = vmatpush1.bf16.msra.mxu0 %v2483
    %2615 = vmatprep.subr.bf16.mxu0 %v2482
    %2616 = vmatpush1.bf16.msra.mxu0 %v2481
    %2617 = vmatprep.subr.bf16.mxu0 %v2480
    %2618 = vmatpush1.bf16.msra.mxu0 %v2479
    %2619 = vmatprep.subr.bf16.mxu0 %v2478
    %2620 = vmatpush1.bf16.msra.mxu0 %v2477
    %2621 = vmatprep.subr.bf16.mxu0 %v2508
    %2622 = vmatpush2.bf16.msra.mxu0 %v2507
    %2623 = vmatprep.subr.bf16.mxu0 %v2506
    %2624 = vmatpush2.bf16.msra.mxu0 %v2505
    %2625 = vmatprep.subr.bf16.mxu0 %v2504
    %2626 = vmatpush2.bf16.msra.mxu0 %v2503
    %2627 = vmatprep.subr.bf16.mxu0 %v2502
    %2628 = vmatpush2.bf16.msra.mxu0 %v2501
    %2629 = vmatprep.subr.bf16.mxu0 %v2500
    %2630 = vmatpush2.bf16.msra.mxu0 %v2499
    %2631 = vmatprep.subr.bf16.mxu0 %v2498
    %2632 = vmatpush2.bf16.msra.mxu0 %v2497
    %2633 = vmatprep.subr.bf16.mxu0 %v2496
    %2634 = vmatpush2.bf16.msra.mxu0 %v2495
    %2635 = vmatprep.subr.bf16.mxu0 %v2494
    %2636 = vmatpush2.bf16.msra.mxu0 %v2493
    %2637 = vmatprep.mubr.bf16.mxu0 %v2206
    %2638 = vmatmul.mubr.bf16.gmra.mxu0 %v2205
    %v2639 = vpop.f32.mrf.mxu0
    %v2640 = vadd.f32 %v2278, %v2639
    %v2641 = vpop.f32.mrf.mxu0
    %v2642 = vadd.f32 %v2282, %v2641
    %v2643 = vpop.f32.mrf.mxu0
    %v2644 = vpop.f32.mrf.mxu0
    %2645 = vdwg.mxu0
    %2646 = vmatprep.subr.bf16.mxu0 %v2524
    %2647 = vmatpush1.bf16.msra.mxu0 %v2523
    %2648 = vmatprep.subr.bf16.mxu0 %v2522
    %2649 = vmatpush1.bf16.msra.mxu0 %v2521
    %2650 = vmatprep.subr.bf16.mxu0 %v2520
    %2651 = vmatpush1.bf16.msra.mxu0 %v2519
    %2652 = vmatprep.subr.bf16.mxu0 %v2518
    %2653 = vmatpush1.bf16.msra.mxu0 %v2517
    %2654 = vmatprep.subr.bf16.mxu0 %v2516
    %2655 = vmatpush1.bf16.msra.mxu0 %v2515
    %2656 = vmatprep.subr.bf16.mxu0 %v2514
    %2657 = vmatpush1.bf16.msra.mxu0 %v2513
    %2658 = vmatprep.subr.bf16.mxu0 %v2512
    %2659 = vmatpush1.bf16.msra.mxu0 %v2511
    %2660 = vmatprep.subr.bf16.mxu0 %v2510
    %2661 = vmatpush1.bf16.msra.mxu0 %v2509
    %2662 = vmatprep.subr.bf16.mxu0 %v2540
    %2663 = vmatpush2.bf16.msra.mxu0 %v2539
    %2664 = vmatprep.subr.bf16.mxu0 %v2538
    %2665 = vmatpush2.bf16.msra.mxu0 %v2537
    %2666 = vmatprep.subr.bf16.mxu0 %v2536
    %2667 = vmatpush2.bf16.msra.mxu0 %v2535
    %2668 = vmatprep.subr.bf16.mxu0 %v2534
    %2669 = vmatpush2.bf16.msra.mxu0 %v2533
    %2670 = vmatprep.subr.bf16.mxu0 %v2532
    %2671 = vmatpush2.bf16.msra.mxu0 %v2531
    %2672 = vmatprep.subr.bf16.mxu0 %v2530
    %2673 = vmatpush2.bf16.msra.mxu0 %v2529
    %2674 = vmatprep.subr.bf16.mxu0 %v2528
    %2675 = vmatpush2.bf16.msra.mxu0 %v2527
    %2676 = vmatprep.subr.bf16.mxu0 %v2526
    %2677 = vmatpush2.bf16.msra.mxu0 %v2525
    %2678 = vmatprep.mubr.bf16.mxu0 %v2208
    %2679 = vmatmul.mubr.bf16.gmra.mxu0 %v2207
    %v2680 = vpop.f32.mrf.mxu0
    %v2681 = vadd.f32 %v2640, %v2680
    %v2682 = vpop.f32.mrf.mxu0
    %v2683 = vadd.f32 %v2642, %v2682
    %v2684 = vpop.f32.mrf.mxu0
    %v2685 = vpop.f32.mrf.mxu0
    %2686 = vdwg.mxu0
    %v2687 = vmax.f32 %v2681, 0.0
    %v2688 = vmax.f32 %v2683, 0.0
    %v2689 = vpack.c.bf16 %v2687, %v2687
    %v2690 = vpack.c.bf16 %v2688, %v2688
    %v2691 = vld [vmem:[#allocation11] sm:$0xf]
    %v2692 = vld [vmem:[#allocation11 + $0x4] sm:$0xf]
    %v2693 = vld [vmem:[#allocation11 + $0x8] sm:$0xf]
    %v2694 = vld [vmem:[#allocation11 + $0xc] sm:$0xf]
    %v2695 = vld [vmem:[#allocation11 + $0x10] sm:$0xf]
    %v2696 = vld [vmem:[#allocation11 + $0x14] sm:$0xf]
    %v2697 = vld [vmem:[#allocation11 + $0x18] sm:$0xf]
    %v2698 = vld [vmem:[#allocation11 + $0x1c] sm:$0xf]
    %v2699 = vld [vmem:[#allocation11 + $0x20] sm:$0xf]
    %v2700 = vld [vmem:[#allocation11 + $0x24] sm:$0xf]
    %v2701 = vld [vmem:[#allocation11 + $0x28] sm:$0xf]
    %v2702 = vld [vmem:[#allocation11 + $0x2c] sm:$0xf]
    %v2703 = vld [vmem:[#allocation11 + $0x30] sm:$0xf]
    %v2704 = vld [vmem:[#allocation11 + $0x34] sm:$0xf]
    %v2705 = vld [vmem:[#allocation11 + $0x38] sm:$0xf]
    %v2706 = vld [vmem:[#allocation11 + $0x3c] sm:$0xf]
    %v2707 = vld [vmem:[#allocation11 + $0x40] sm:$0xf]
    %v2708 = vld [vmem:[#allocation11 + $0x44] sm:$0xf]
    %v2709 = vld [vmem:[#allocation11 + $0x48] sm:$0xf]
    %v2710 = vld [vmem:[#allocation11 + $0x4c] sm:$0xf]
    %v2711 = vld [vmem:[#allocation11 + $0x50] sm:$0xf]
    %v2712 = vld [vmem:[#allocation11 + $0x54] sm:$0xf]
    %v2713 = vld [vmem:[#allocation11 + $0x58] sm:$0xf]
    %v2714 = vld [vmem:[#allocation11 + $0x5c] sm:$0xf]
    %v2715 = vld [vmem:[#allocation11 + $0x60] sm:$0xf]
    %v2716 = vld [vmem:[#allocation11 + $0x64] sm:$0xf]
    %v2717 = vld [vmem:[#allocation11 + $0x68] sm:$0xf]
    %v2718 = vld [vmem:[#allocation11 + $0x6c] sm:$0xf]
    %v2719 = vld [vmem:[#allocation11 + $0x70] sm:$0xf]
    %v2720 = vld [vmem:[#allocation11 + $0x74] sm:$0xf]
    %v2721 = vld [vmem:[#allocation11 + $0x78] sm:$0xf]
    %v2722 = vld [vmem:[#allocation11 + $0x7c] sm:$0xf]
    %v2723 = vld [vmem:[#allocation13] sm:$0x1]
    %v2725 = vlaneseq
    %v2726 = vshrl.u32 %v2725, 7
    %v2727 = vsub.s32 0, %v2726
    %v2728 = vrot.slane %v2723, %v2727
    %v2762 = vunpack.c.l.b16 %v2691
    %v2763 = vunpack.c.l.b16 %v2692
    %v2764 = vunpack.c.l.b16 %v2693
    %v2765 = vunpack.c.l.b16 %v2694
    %v2766 = vunpack.c.l.b16 %v2695
    %v2767 = vunpack.c.l.b16 %v2696
    %v2768 = vunpack.c.l.b16 %v2697
    %v2769 = vunpack.c.l.b16 %v2698
    %v2770 = vunpack.c.l.b16 %v2699
    %v2771 = vunpack.c.l.b16 %v2700
    %v2772 = vunpack.c.l.b16 %v2701
    %v2773 = vunpack.c.l.b16 %v2702
    %v2774 = vunpack.c.l.b16 %v2703
    %v2775 = vunpack.c.l.b16 %v2704
    %v2776 = vunpack.c.l.b16 %v2705
    %v2777 = vunpack.c.l.b16 %v2706
    %v2778 = vunpack.c.l.b16 %v2707
    %v2779 = vunpack.c.l.b16 %v2708
    %v2780 = vunpack.c.l.b16 %v2709
    %v2781 = vunpack.c.l.b16 %v2710
    %v2782 = vunpack.c.l.b16 %v2711
    %v2783 = vunpack.c.l.b16 %v2712
    %v2784 = vunpack.c.l.b16 %v2713
    %v2785 = vunpack.c.l.b16 %v2714
    %v2786 = vunpack.c.l.b16 %v2715
    %v2787 = vunpack.c.l.b16 %v2716
    %v2788 = vunpack.c.l.b16 %v2717
    %v2789 = vunpack.c.l.b16 %v2718
    %v2790 = vunpack.c.l.b16 %v2719
    %v2791 = vunpack.c.l.b16 %v2720
    %v2792 = vunpack.c.l.b16 %v2721
    %v2793 = vunpack.c.l.b16 %v2722
    %v2794 = vpack.c.b16 %v2763, %v2762
    %v2795 = vpack.c.b16 %v2765, %v2764
    %v2796 = vpack.c.b16 %v2767, %v2766
    %v2797 = vpack.c.b16 %v2769, %v2768
    %v2798 = vpack.c.b16 %v2771, %v2770
    %v2799 = vpack.c.b16 %v2773, %v2772
    %v2800 = vpack.c.b16 %v2775, %v2774
    %v2801 = vpack.c.b16 %v2777, %v2776
    %v2802 = vpack.c.b16 %v2779, %v2778
    %v2803 = vpack.c.b16 %v2781, %v2780
    %v2804 = vpack.c.b16 %v2783, %v2782
    %v2805 = vpack.c.b16 %v2785, %v2784
    %v2806 = vpack.c.b16 %v2787, %v2786
    %v2807 = vpack.c.b16 %v2789, %v2788
    %v2808 = vpack.c.b16 %v2791, %v2790
    %v2809 = vpack.c.b16 %v2793, %v2792
    %2826 = vmatprep.subr.bf16.mxu0 0
    %2827 = vmatpush1.bf16.msra.mxu0 %v2801
    %2828 = vmatprep.subr.bf16.mxu0 0
    %2829 = vmatpush1.bf16.msra.mxu0 %v2800
    %2830 = vmatprep.subr.bf16.mxu0 0
    %2831 = vmatpush1.bf16.msra.mxu0 %v2799
    %2832 = vmatprep.subr.bf16.mxu0 0
    %2833 = vmatpush1.bf16.msra.mxu0 %v2798
    %2834 = vmatprep.subr.bf16.mxu0 0
    %2835 = vmatpush1.bf16.msra.mxu0 %v2797
    %2836 = vmatprep.subr.bf16.mxu0 0
    %2837 = vmatpush1.bf16.msra.mxu0 %v2796
    %2838 = vmatprep.subr.bf16.mxu0 0
    %2839 = vmatpush1.bf16.msra.mxu0 %v2795
    %2840 = vmatprep.subr.bf16.mxu0 0
    %2841 = vmatpush1.bf16.msra.mxu0 %v2794
    %2842 = vmatprep.subr.bf16.mxu0 0
    %2843 = vmatpush2.bf16.msra.mxu0 %v2809
    %2844 = vmatprep.subr.bf16.mxu0 0
    %2845 = vmatpush2.bf16.msra.mxu0 %v2808
    %2846 = vmatprep.subr.bf16.mxu0 0
    %2847 = vmatpush2.bf16.msra.mxu0 %v2807
    %2848 = vmatprep.subr.bf16.mxu0 0
    %2849 = vmatpush2.bf16.msra.mxu0 %v2806
    %2850 = vmatprep.subr.bf16.mxu0 0
    %2851 = vmatpush2.bf16.msra.mxu0 %v2805
    %2852 = vmatprep.subr.bf16.mxu0 0
    %2853 = vmatpush2.bf16.msra.mxu0 %v2804
    %2854 = vmatprep.subr.bf16.mxu0 0
    %2855 = vmatpush2.bf16.msra.mxu0 %v2803
    %2856 = vmatprep.subr.bf16.mxu0 0
    %2857 = vmatpush2.bf16.msra.mxu0 %v2802
    %2858 = vmatprep.mubr.bf16.mxu0 %v2690
    %2859 = vmatmul.mubr.bf16.gmra.mxu0 %v2689
    %v2860 = vpop.f32.mrf.mxu0
    %v2861 = vadd.f32 %v2728, %v2860
    %v2862 = vpop.f32.mrf.mxu0
    %v2863 = vpop.f32.mrf.mxu0
    %v2864 = vpop.f32.mrf.mxu0
    %2865 = vdwg.mxu0
    %v2866 = vpack.c.bf16 %v2861, %v2861
    %2867 = vst [vmem:[#allocation14] sm:$0xf] %v2866
    // Predicated region
    $region58: #{tpu_custom_call.1} parent=1 // pred_check
      _
    $region59: #{tpu_custom_call.1} parent=1 // pred_check_branch
      %2869 = sbr.rel (0) target = $region61
    $region60: #{tpu_custom_call.1} parent=1 // pred_region
      %s2871 = ssub.s32 64, 64
      %2872 = vsyncadd [#allocation4], %s2871
      %s2874 = sshll.u32 [#allocation14], 4
      %s2875 = int_to_ptr.vmem [resolvable:$true] %s2874
      %2877 = dma.vmem_to_hbm [thread:$0]  %s2875, 64, %s7, [#allocation4]
    $region61: #{tpu_custom_call.1} parent=1 // pred_fallthru
      _
    // Predicated region
    $region62: #{tpu_custom_call.1} parent=1 // pred_check
      _
    $region63: #{tpu_custom_call.1} parent=1 // pred_check_branch
      %2879 = sbr.rel (0) target = $region65
    $region64: #{tpu_custom_call.1} parent=1 // pred_region
      %2880 = dma.done [#allocation4], 64
    $region65: #{tpu_custom_call.1} parent=1 // pred_fallthru
      _
    %2881 = vsyncpa [#allocation3], 1
    %2882 = vsyncpa [#allocation6], 1
    %2883 = vsyncpa [#allocation9], 1
    %2884 = vsyncpa [#allocation12], 1
    %2885 = vsyncpa [#allocation4], 1

</llo_original>
